<compile_context>
chip_gen: v6e
topology: v6e:2x2x1
jax: 0.10.0
libtpu: 0.0.40
codegen_flags: <defaults>
</compile_context>

<pallas_src>
import functools

import jax
import jax.numpy as jnp
from jax import lax
from jax.experimental import pallas as pl
from jax.experimental.pallas import tpu as pltpu

EPS = 1e-5


# ---------------------------------------------------------------------------
# shared per-tile conv: 9 accumulating MXU matmuls (K = Cin) on a flattened tile
# ---------------------------------------------------------------------------
def _conv_tile(mid_ref, prev_ref, next_ref, w_ref, mask_ref, *, W, L, have_halo):
    """3x3 conv (stride 1, pad 1) of one flattened row-tile.

    mid_ref  : (1, Cin, L)   current tile, L = tile_h * W (lane-dense)
    prev_ref : (1, Cin, L)   previous tile (clamped), only its last row is used
    next_ref : (1, Cin, L)   next tile (clamped), only its first row is used
    w_ref    : (9, Cout, Cin) tap-major weights, k = dh*3 + dw
    mask_ref : (8, L) f32 rows: 0 not_left, 1 not_right, 2 is_first_row,
               3 not_first_row, 4 is_last_row, 5 not_last_row
    returns  : (Cout, L) float32
    """
    t = pl.program_id(1)
    num_t = pl.num_programs(1)

    mid = mid_ref[0].astype(jnp.float32)                    # (Cin, L), no reshape

    not_left = mask_ref[0:1, :]
    not_right = mask_ref[1:2, :]
    is_first = mask_ref[2:3, :]
    not_first = mask_ref[3:4, :]
    is_last = mask_ref[4:5, :]
    not_last = mask_ref[5:6, :]

    # Vertical +/-1 row shift on the lane axis; first/last row spliced from the
    # neighbouring tile (or zero at the image border) via mask-multiplies.
    up = pltpu.roll(mid, shift=W, axis=1) * not_first        # x[h-1, w]
    dn = pltpu.roll(mid, shift=L - W, axis=1) * not_last     # x[h+1, w]
    if have_halo:
        prev = prev_ref[0].astype(jnp.float32)
        nxt = next_ref[0].astype(jnp.float32)
        top_gate = (t > 0).astype(jnp.float32)
        bot_gate = (t < num_t - 1).astype(jnp.float32)
        up = up + pltpu.roll(prev, shift=W, axis=1) * (is_first * top_gate)
        dn = dn + pltpu.roll(nxt, shift=L - W, axis=1) * (is_last * bot_gate)

    # 9 accumulating matmuls, K = Cin, each tap built and immediately consumed.
    acc = None
    for dh, src in enumerate((up, mid, dn)):
        left = pltpu.roll(src, shift=1, axis=1) * not_left         # x[., w-1]
        right = pltpu.roll(src, shift=L - 1, axis=1) * not_right   # x[., w+1]
        for dw, tap in ((0, left), (1, src), (2, right)):
            w_tap = w_ref[dh * 3 + dw].astype(jnp.float32)         # (Cout, Cin)
            p = jnp.dot(w_tap, tap, preferred_element_type=jnp.float32)
            acc = p if acc is None else acc + p
    return acc                                                      # (Cout, L) f32


# ---------------------------------------------------------------------------
# pass 1: per-tile centered BN partials (sum, M2) (+ optional conv intermediate)
# ---------------------------------------------------------------------------
def _stats_kernel(*refs, W, L, have_halo, emit_conv):
    n_in = 5 if have_halo else 3
    if have_halo:
        mid_ref, prev_ref, next_ref, w_ref, mask_ref = refs[:n_in]
    else:
        mid_ref, w_ref, mask_ref = refs[:n_in]
        prev_ref = next_ref = None
    stat_ref = refs[n_in]
    conv_out_ref = refs[n_in + 1] if emit_conv else None

    conv = _conv_tile(mid_ref, prev_ref, next_ref, w_ref, mask_ref,
                      W=W, L=L, have_halo=have_halo)                # (Cout, L)

    # Reductions on the MXU (has slack after the small-K conv matmuls).
    ones = jnp.ones((L, 1), jnp.float32)
    s = jnp.dot(conv, ones, preferred_element_type=jnp.float32)     # (Cout, 1)
    mu = s * (1.0 / L)
    d = conv - mu
    m2 = jnp.dot(d * d, ones, preferred_element_type=jnp.float32)   # (Cout, 1)
    stat_ref[0, 0] = jnp.concatenate([s, m2], axis=1)               # (Cout, 2)

    if emit_conv:
        conv_out_ref[0] = conv.astype(conv_out_ref.dtype)           # lane-dense store


# ---------------------------------------------------------------------------
# pass 2a (recompute mode): conv + fused BN scale/shift + ReLU
# ---------------------------------------------------------------------------
def _apply_recompute_kernel(*refs, W, L, have_halo):
    n_in = 5 if have_halo else 3
    if have_halo:
        mid_ref, prev_ref, next_ref, w_ref, mask_ref = refs[:n_in]
    else:
        mid_ref, w_ref, mask_ref = refs[:n_in]
        prev_ref = next_ref = None
    scale_ref, shift_ref, o_ref = refs[n_in:]

    conv = _conv_tile(mid_ref, prev_ref, next_ref, w_ref, mask_ref,
                      W=W, L=L, have_halo=have_halo)
    y = jnp.maximum(conv * scale_ref[...] + shift_ref[...], 0.0)
    o_ref[0] = y.astype(o_ref.dtype)


# ---------------------------------------------------------------------------
# pass 2b (intermediate mode, v7x): pure elementwise BN scale/shift + ReLU
# ---------------------------------------------------------------------------
def _apply_elementwise_kernel(conv_ref, scale_ref, shift_ref, o_ref):
    y = conv_ref[0].astype(jnp.float32)
    y = jnp.maximum(y * scale_ref[...] + shift_ref[...], 0.0)
    o_ref[0] = y.astype(o_ref.dtype)


# ---------------------------------------------------------------------------
# wrapper helpers
# ---------------------------------------------------------------------------
def _tpu_limits():
    """(tiling budget, vmem_limit_bytes) derived from the chip's physical VMEM."""
    try:
        vmem = int(pltpu.get_tpu_info().vmem_capacity_bytes)
    except Exception:
        vmem = 64 << 20
    budget = max(vmem // 8, 4 << 20)        # ~16 MiB on v5e/v6e, ~8 MiB on v7x
    limit = int(vmem * 3 // 4)              # ~96 MiB on v5e/v6e, ~48 MiB on v7x
    return budget, limit


def _default_mode():
    # v7x (3.2 TB/s HBM): store the conv intermediate, make pass 2 elementwise.
    # v5e/v6e: recompute the conv in pass 2 (HBM bytes are the scarcer resource).
    try:
        kind = jax.devices()[0].device_kind.lower()
        if "v7" in kind or "7x" in kind:
            return "intermediate"
    except Exception:
        pass
    return "recompute"


def _tile_ok(th, H, W):
    if th <= 0 or H % th:
        return False
    return th == H or ((th * W) % 128 == 0)


def _pick_tile_h(H, W, cin, cout, budget_bytes, inter_bytes=0):
    """Largest divisor of H whose per-step working set fits the budget,
    preferring L = tile_h*W that is a multiple of 256 (full v6e/v7x MXU pass)."""
    def est(th):
        L = th * W
        halo = 2 if th < H else 0
        b = 2 * (1 + halo) * cin * L * 4          # double-buffered input (+halo) blocks
        b += 2 * cout * L * 4                     # double-buffered output block
        b += 2 * cout * L * inter_bytes           # optional conv intermediate block
        b += 2 * 9 * cout * cin * 4               # double-buffered weight block
        b += (6 * cin + 3 * cout) * L * 4         # in-kernel temporaries (rolls/taps/acc)
        return b

    cands = [th for th in range(H, 0, -1) if _tile_ok(th, H, W)]   # descending
    fitting = [th for th in cands if est(th) <= budget_bytes]
    if fitting:
        pref = [th for th in fitting if th == H or (th * W) % 256 == 0]
        return pref[0] if pref else fitting[0]
    return cands[-1]


# ---------------------------------------------------------------------------
# wrapper
# ---------------------------------------------------------------------------
def single_conv(x, w, bias, gamma, beta, *, tile_h=None, mode=None,
                intermediate_dtype=jnp.float32):
    """x: (N, Cin, H, W) f32, w: (Cout, Cin, 3, 3). Returns (N, Cout, H, W)."""
    N, cin, H, W = x.shape
    cout = w.shape[0]
    # Conv bias is exactly cancelled by training-mode BatchNorm's mean subtraction.
    del bias

    if mode is None:
        mode = _default_mode()
    assert mode in ("recompute", "intermediate")
    emit_conv = mode == "intermediate"
    inter_bytes = jnp.dtype(intermediate_dtype).itemsize if emit_conv else 0

    budget, vmem_limit = _tpu_limits()
    if tile_h is None:
        tile_h = _pick_tile_h(H, W, cin, cout, budget, inter_bytes)
    assert H % tile_h == 0 and _tile_ok(tile_h, H, W), "bad tile_h"
    T = H // tile_h
    L = tile_h * W
    HW = H * W
    have_halo = T > 1

    # Free HBM metadata reshape: the kernel sees a lane-dense (Cin, L) tile directly.
    x_flat = x.reshape(N, cin, HW)
    # (Cout, Cin, 3, 3) -> (9, Cout, Cin), k = dh*3 + dw.
    wt = jnp.transpose(w, (2, 3, 0, 1)).reshape(9, cout, cin).astype(jnp.float32)

    # Tile-invariant edge masks, hoisted out of the kernel (one tiny operand).
    lane = jnp.arange(L, dtype=jnp.int32)
    wpos = lane % W
    is_first = lane < W
    is_last = lane >= L - W
    masks = jnp.stack([
        wpos != 0, wpos != W - 1,
        is_first, ~is_first,
        is_last, ~is_last,
        jnp.zeros_like(is_first), jnp.zeros_like(is_first),
    ]).astype(jnp.float32)                                           # (8, L)

    grid = (N, T)
    mid_spec = pl.BlockSpec((1, cin, L), lambda n, t: (n, 0, t))
    if have_halo:
        halo_specs = [
            pl.BlockSpec((1, cin, L), lambda n, t: (n, 0, jnp.maximum(t - 1, 0))),
            pl.BlockSpec((1, cin, L), lambda n, t: (n, 0, jnp.minimum(t + 1, T - 1))),
        ]
        xs_args = [x_flat, x_flat, x_flat]
    else:
        halo_specs = []
        xs_args = [x_flat]
    w_spec = pl.BlockSpec((9, cout, cin), lambda n, t: (0, 0, 0))
    m_spec = pl.BlockSpec((8, L), lambda n, t: (0, 0))
    vec_spec = pl.BlockSpec((cout, 1), lambda n, t: (0, 0))
    out_spec = pl.BlockSpec((1, cout, L), lambda n, t: (n, 0, t))
    in_specs_conv = [mid_spec] + halo_specs + [w_spec, m_spec]

    cparams = pltpu.CompilerParams(
        dimension_semantics=("parallel", "parallel"),
        vmem_limit_bytes=int(vmem_limit),
    )
    conv_flops = 2 * N * HW * 9 * cin * cout
    x_bytes = (3 if have_halo else 1) * x.size * x.dtype.itemsize
    w_bytes = wt.size * 4

    # ---- pass 1: per-tile centered BN partials (+ optional conv intermediate) ----
    stats_shape = jax.ShapeDtypeStruct((N, T, cout, 2), jnp.float32)
    stats_spec = pl.BlockSpec((1, 1, cout, 2), lambda n, t: (n, t, 0, 0))
    if emit_conv:
        out_shape1 = (stats_shape, jax.ShapeDtypeStruct((N, cout, HW), intermediate_dtype))
        out_specs1 = (stats_spec, out_spec)
    else:
        out_shape1 = stats_shape
        out_specs1 = stats_spec

    res1 = pl.pallas_call(
        functools.partial(_stats_kernel, W=W, L=L, have_halo=have_halo,
                          emit_conv=emit_conv),
        out_shape=out_shape1,
        grid=grid,
        in_specs=in_specs_conv,
        out_specs=out_specs1,
        compiler_params=cparams,
        cost_estimate=pl.CostEstimate(
            flops=conv_flops, transcendentals=0,
            bytes_accessed=x_bytes + w_bytes + N * T * cout * 2 * 4
            + (N * cout * HW * inter_bytes if emit_conv else 0)),
    )(*xs_args, wt, masks)
    if emit_conv:
        stats, conv_inter = res1
    else:
        stats, conv_inter = res1, None

    # ---- tiny glue: parallel-variance combine -> fused per-channel scale/shift ----
    count = jnp.float32(N * HW)
    s_tiles = stats[..., 0]                                       # (N, T, Cout) sums
    m2_tiles = stats[..., 1]                                      # (N, T, Cout) centered M2
    mean = jnp.sum(s_tiles, axis=(0, 1)) / count                  # (Cout,)
    mu_tiles = s_tiles / jnp.float32(L)
    m2 = jnp.sum(m2_tiles, axis=(0, 1)) + jnp.float32(L) * jnp.sum(
        (mu_tiles - mean) ** 2, axis=(0, 1))
    var = jnp.maximum(m2 / count, 0.0)                            # biased variance
    scale = gamma.astype(jnp.float32) * lax.rsqrt(var + EPS)
    shift = beta.astype(jnp.float32) - mean * scale
    scale2 = scale.reshape(cout, 1)
    shift2 = shift.reshape(cout, 1)

    # ---- pass 2: BN scale/shift + ReLU ----
    out_shape2 = jax.ShapeDtypeStruct((N, cout, HW), x.dtype)
    if emit_conv:
        out_flat = pl.pallas_call(
            _apply_elementwise_kernel,
            out_shape=out_shape2,
            grid=grid,
            in_specs=[out_spec, vec_spec, vec_spec],
            out_specs=out_spec,
            compiler_params=cparams,
            cost_estimate=pl.CostEstimate(
                flops=2 * N * cout * HW, transcendentals=0,
                bytes_accessed=N * cout * HW * (inter_bytes + x.dtype.itemsize)),
        )(conv_inter, scale2, shift2)
    else:
        out_flat = pl.pallas_call(
            functools.partial(_apply_recompute_kernel, W=W, L=L, have_halo=have_halo),
            out_shape=out_shape2,
            grid=grid,
            in_specs=in_specs_conv + [vec_spec, vec_spec],
            out_specs=out_spec,
            compiler_params=cparams,
            cost_estimate=pl.CostEstimate(
                flops=conv_flops, transcendentals=0,
                bytes_accessed=x_bytes + w_bytes + N * cout * HW * x.dtype.itemsize),
        )(*xs_args, wt, masks, scale2, shift2)

    return out_flat.reshape(N, cout, H, W)       # already NCHW, contiguous reshape


# ---------------------------------------------------------------------------
# pure-JAX reference (PyTorch module forward, training-mode BatchNorm)
# ---------------------------------------------------------------------------
def reference(x_nchw, w_oihw, bias, gamma, beta):
    y = lax.conv_general_dilated(
        x_nchw, w_oihw, window_strides=(1, 1), padding=((1, 1), (1, 1)),
        dimension_numbers=("NCHW", "OIHW", "NCHW"))
    y = y + bias[None, :, None, None]
    mean = jnp.mean(y, axis=(0, 2, 3), keepdims=True)
    var = jnp.mean((y - mean) ** 2, axis=(0, 2, 3), keepdims=True)
    y = (y - mean) * lax.rsqrt(var + EPS)
    y = y * gamma[None, :, None, None] + beta[None, :, None, None]
    return jnp.maximum(y, 0.0)


if __name__ == "__main__":
    key = jax.random.PRNGKey(0)
    N, Cin, Cout, H, W = 2, 4, 8, 16, 16

    kx, kw, kb, kg, kbe = jax.random.split(key, 5)
    x = jax.random.normal(kx, (N, Cin, H, W), dtype=jnp.float32)

    fan_in = Cin * 3 * 3
    bound = 1.0 / (fan_in ** 0.5)
    w = jax.random.uniform(kw, (Cout, Cin, 3, 3), jnp.float32, -bound, bound)
    b = jax.random.uniform(kb, (Cout,), jnp.float32, -bound, bound)
    gamma = 1.0 + 0.1 * jax.random.normal(kg, (Cout,), jnp.float32)
    beta = 0.1 * jax.random.normal(kbe, (Cout,), jnp.float32)

    ref = reference(x, w, b, gamma, beta)

    configs = [
        dict(tile_h=None, mode=None),           # auto tile + chip-dependent mode
        dict(tile_h=8, mode="recompute"),       # multi-tile halo path, conv recompute
        dict(tile_h=8, mode="intermediate"),    # multi-tile halo path, stored conv
        dict(tile_h=16, mode="intermediate"),   # single-tile path, stored conv
    ]
    for cfg in configs:
        fn = jax.jit(functools.partial(single_conv, **cfg))
        out = jax.block_until_ready(fn(x, w, b, gamma, beta))
        assert out.shape == (N, Cout, H, W)
        err = float(jnp.max(jnp.abs(out - ref)))
        assert jnp.allclose(out, ref, atol=1e-4, rtol=1e-4), \
            f"{cfg}: max abs err = {err}"

    print("KERNEL_OK")
</pallas_src>

<mosaic_0001>
module attributes {stable_mosaic.version = 11 : i64} {
  func.func @_apply_recompute_kernel(%arg0: i32, %arg1: i32, %arg2: memref<1x4x256xf32, #tpu.memory_space<vmem>>, %arg3: memref<9x8x4xf32, #tpu.memory_space<vmem>>, %arg4: memref<8x256xf32, #tpu.memory_space<vmem>>, %arg5: memref<8x1xf32, #tpu.memory_space<vmem>>, %arg6: memref<8x1xf32, #tpu.memory_space<vmem>>, %arg7: memref<1x8x256xf32, #tpu.memory_space<vmem>>) attributes {dimension_semantics = [#tpu.dimension_semantics<parallel>, #tpu.dimension_semantics<parallel>], iteration_bounds = array<i64: 2, 1>, scalar_prefetch = 0 : i64, scratch_operands = 0 : i64, tpu.core_type = #tpu.core_type<tc>, window_params = [{transform_indices = @transform_0, window_bounds = array<i64: 1, 4, 256>}, {pipeline_mode = #tpu.pipeline_mode<synchronous>, transform_indices = @transform_1, window_bounds = array<i64: 9, 8, 4>}, {pipeline_mode = #tpu.pipeline_mode<synchronous>, transform_indices = @transform_2, window_bounds = array<i64: 8, 256>}, {pipeline_mode = #tpu.pipeline_mode<synchronous>, transform_indices = @transform_3, window_bounds = array<i64: 8, 1>}, {pipeline_mode = #tpu.pipeline_mode<synchronous>, transform_indices = @transform_4, window_bounds = array<i64: 8, 1>}, {transform_indices = @transform_5, window_bounds = array<i64: 1, 8, 256>}]} {
    %c0 = arith.constant 0 : index
    %c0_0 = arith.constant 0 : index
    %c0_1 = arith.constant 0 : index
    %0 = vector.load %arg2[%c0, %c0_0, %c0_1] : memref<1x4x256xf32, #tpu.memory_space<vmem>>, vector<1x4x256xf32>
    %1 = vector.shape_cast %0 : vector<1x4x256xf32> to vector<4x256xf32>
    %c0_2 = arith.constant 0 : index
    %c0_3 = arith.constant 0 : index
    %2 = vector.load %arg4[%c0_2, %c0_3] : memref<8x256xf32, #tpu.memory_space<vmem>>, vector<1x256xf32>
    %c1 = arith.constant 1 : index
    %c0_4 = arith.constant 0 : index
    %3 = vector.load %arg4[%c1, %c0_4] : memref<8x256xf32, #tpu.memory_space<vmem>>, vector<1x256xf32>
    %c3 = arith.constant 3 : index
    %c0_5 = arith.constant 0 : index
    %4 = vector.load %arg4[%c3, %c0_5] : memref<8x256xf32, #tpu.memory_space<vmem>>, vector<1x256xf32>
    %c5 = arith.constant 5 : index
    %c0_6 = arith.constant 0 : index
    %5 = vector.load %arg4[%c5, %c0_6] : memref<8x256xf32, #tpu.memory_space<vmem>>, vector<1x256xf32>
    %c16_i32 = arith.constant 16 : i32
    %6 = tpu.dynamic_rotate %1 by %c16_i32 dim 1 : vector<4x256xf32>, i32 -> vector<4x256xf32>
    %7 = vector.broadcast %4 : vector<1x256xf32> to vector<4x256xf32>
    %8 = arith.mulf %6, %7 : vector<4x256xf32>
    %c240_i32 = arith.constant 240 : i32
    %9 = tpu.dynamic_rotate %1 by %c240_i32 dim 1 : vector<4x256xf32>, i32 -> vector<4x256xf32>
    %10 = vector.broadcast %5 : vector<1x256xf32> to vector<4x256xf32>
    %11 = arith.mulf %9, %10 : vector<4x256xf32>
    %c1_i32 = arith.constant 1 : i32
    %12 = tpu.dynamic_rotate %8 by %c1_i32 dim 1 : vector<4x256xf32>, i32 -> vector<4x256xf32>
    %13 = vector.broadcast %2 : vector<1x256xf32> to vector<4x256xf32>
    %14 = arith.mulf %12, %13 : vector<4x256xf32>
    %c255_i32 = arith.constant 255 : i32
    %15 = tpu.dynamic_rotate %8 by %c255_i32 dim 1 : vector<4x256xf32>, i32 -> vector<4x256xf32>
    %16 = vector.broadcast %3 : vector<1x256xf32> to vector<4x256xf32>
    %17 = arith.mulf %15, %16 : vector<4x256xf32>
    %c0_7 = arith.constant 0 : index
    %c0_8 = arith.constant 0 : index
    %c0_9 = arith.constant 0 : index
    %18 = vector.load %arg3[%c0_7, %c0_8, %c0_9] : memref<9x8x4xf32, #tpu.memory_space<vmem>>, vector<1x8x4xf32>
    %19 = vector.shape_cast %18 : vector<1x8x4xf32> to vector<8x4xf32>
    %cst = arith.constant dense<0.000000e+00> : vector<8x256xf32>
    %20 = tpu.matmul %19, %14, %cst {dimension_numbers = #tpu.dot_dimension_numbers<[1], [0], [0], [1], [0, 0, 1, 1], [], []>} : vector<8x4xf32>, vector<4x256xf32>, vector<8x256xf32> -> vector<8x256xf32>
    %c1_10 = arith.constant 1 : index
    %c0_11 = arith.constant 0 : index
    %c0_12 = arith.constant 0 : index
    %21 = vector.load %arg3[%c1_10, %c0_11, %c0_12] : memref<9x8x4xf32, #tpu.memory_space<vmem>>, vector<1x8x4xf32>
    %22 = vector.shape_cast %21 : vector<1x8x4xf32> to vector<8x4xf32>
    %cst_13 = arith.constant dense<0.000000e+00> : vector<8x256xf32>
    %23 = tpu.matmul %22, %8, %cst_13 {dimension_numbers = #tpu.dot_dimension_numbers<[1], [0], [0], [1], [0, 0, 1, 1], [], []>} : vector<8x4xf32>, vector<4x256xf32>, vector<8x256xf32> -> vector<8x256xf32>
    %24 = arith.addf %20, %23 : vector<8x256xf32>
    %c2 = arith.constant 2 : index
    %c0_14 = arith.constant 0 : index
    %c0_15 = arith.constant 0 : index
    %25 = vector.load %arg3[%c2, %c0_14, %c0_15] : memref<9x8x4xf32, #tpu.memory_space<vmem>>, vector<1x8x4xf32>
    %26 = vector.shape_cast %25 : vector<1x8x4xf32> to vector<8x4xf32>
    %cst_16 = arith.constant dense<0.000000e+00> : vector<8x256xf32>
    %27 = tpu.matmul %26, %17, %cst_16 {dimension_numbers = #tpu.dot_dimension_numbers<[1], [0], [0], [1], [0, 0, 1, 1], [], []>} : vector<8x4xf32>, vector<4x256xf32>, vector<8x256xf32> -> vector<8x256xf32>
    %28 = arith.addf %24, %27 : vector<8x256xf32>
    %c1_i32_17 = arith.constant 1 : i32
    %29 = tpu.dynamic_rotate %1 by %c1_i32_17 dim 1 : vector<4x256xf32>, i32 -> vector<4x256xf32>
    %30 = vector.broadcast %2 : vector<1x256xf32> to vector<4x256xf32>
    %31 = arith.mulf %29, %30 : vector<4x256xf32>
    %c255_i32_18 = arith.constant 255 : i32
    %32 = tpu.dynamic_rotate %1 by %c255_i32_18 dim 1 : vector<4x256xf32>, i32 -> vector<4x256xf32>
    %33 = vector.broadcast %3 : vector<1x256xf32> to vector<4x256xf32>
    %34 = arith.mulf %32, %33 : vector<4x256xf32>
    %c3_19 = arith.constant 3 : index
    %c0_20 = arith.constant 0 : index
    %c0_21 = arith.constant 0 : index
    %35 = vector.load %arg3[%c3_19, %c0_20, %c0_21] : memref<9x8x4xf32, #tpu.memory_space<vmem>>, vector<1x8x4xf32>
    %36 = vector.shape_cast %35 : vector<1x8x4xf32> to vector<8x4xf32>
    %cst_22 = arith.constant dense<0.000000e+00> : vector<8x256xf32>
    %37 = tpu.matmul %36, %31, %cst_22 {dimension_numbers = #tpu.dot_dimension_numbers<[1], [0], [0], [1], [0, 0, 1, 1], [], []>} : vector<8x4xf32>, vector<4x256xf32>, vector<8x256xf32> -> vector<8x256xf32>
    %38 = arith.addf %28, %37 : vector<8x256xf32>
    %c4 = arith.constant 4 : index
    %c0_23 = arith.constant 0 : index
    %c0_24 = arith.constant 0 : index
    %39 = vector.load %arg3[%c4, %c0_23, %c0_24] : memref<9x8x4xf32, #tpu.memory_space<vmem>>, vector<1x8x4xf32>
    %40 = vector.shape_cast %39 : vector<1x8x4xf32> to vector<8x4xf32>
    %cst_25 = arith.constant dense<0.000000e+00> : vector<8x256xf32>
    %41 = tpu.matmul %40, %1, %cst_25 {dimension_numbers = #tpu.dot_dimension_numbers<[1], [0], [0], [1], [0, 0, 1, 1], [], []>} : vector<8x4xf32>, vector<4x256xf32>, vector<8x256xf32> -> vector<8x256xf32>
    %42 = arith.addf %38, %41 : vector<8x256xf32>
    %c5_26 = arith.constant 5 : index
    %c0_27 = arith.constant 0 : index
    %c0_28 = arith.constant 0 : index
    %43 = vector.load %arg3[%c5_26, %c0_27, %c0_28] : memref<9x8x4xf32, #tpu.memory_space<vmem>>, vector<1x8x4xf32>
    %44 = vector.shape_cast %43 : vector<1x8x4xf32> to vector<8x4xf32>
    %cst_29 = arith.constant dense<0.000000e+00> : vector<8x256xf32>
    %45 = tpu.matmul %44, %34, %cst_29 {dimension_numbers = #tpu.dot_dimension_numbers<[1], [0], [0], [1], [0, 0, 1, 1], [], []>} : vector<8x4xf32>, vector<4x256xf32>, vector<8x256xf32> -> vector<8x256xf32>
    %46 = arith.addf %42, %45 : vector<8x256xf32>
    %c1_i32_30 = arith.constant 1 : i32
    %47 = tpu.dynamic_rotate %11 by %c1_i32_30 dim 1 : vector<4x256xf32>, i32 -> vector<4x256xf32>
    %48 = vector.broadcast %2 : vector<1x256xf32> to vector<4x256xf32>
    %49 = arith.mulf %47, %48 : vector<4x256xf32>
    %c255_i32_31 = arith.constant 255 : i32
    %50 = tpu.dynamic_rotate %11 by %c255_i32_31 dim 1 : vector<4x256xf32>, i32 -> vector<4x256xf32>
    %51 = vector.broadcast %3 : vector<1x256xf32> to vector<4x256xf32>
    %52 = arith.mulf %50, %51 : vector<4x256xf32>
    %c6 = arith.constant 6 : index
    %c0_32 = arith.constant 0 : index
    %c0_33 = arith.constant 0 : index
    %53 = vector.load %arg3[%c6, %c0_32, %c0_33] : memref<9x8x4xf32, #tpu.memory_space<vmem>>, vector<1x8x4xf32>
    %54 = vector.shape_cast %53 : vector<1x8x4xf32> to vector<8x4xf32>
    %cst_34 = arith.constant dense<0.000000e+00> : vector<8x256xf32>
    %55 = tpu.matmul %54, %49, %cst_34 {dimension_numbers = #tpu.dot_dimension_numbers<[1], [0], [0], [1], [0, 0, 1, 1], [], []>} : vector<8x4xf32>, vector<4x256xf32>, vector<8x256xf32> -> vector<8x256xf32>
    %56 = arith.addf %46, %55 : vector<8x256xf32>
    %c7 = arith.constant 7 : index
    %c0_35 = arith.constant 0 : index
    %c0_36 = arith.constant 0 : index
    %57 = vector.load %arg3[%c7, %c0_35, %c0_36] : memref<9x8x4xf32, #tpu.memory_space<vmem>>, vector<1x8x4xf32>
    %58 = vector.shape_cast %57 : vector<1x8x4xf32> to vector<8x4xf32>
    %cst_37 = arith.constant dense<0.000000e+00> : vector<8x256xf32>
    %59 = tpu.matmul %58, %11, %cst_37 {dimension_numbers = #tpu.dot_dimension_numbers<[1], [0], [0], [1], [0, 0, 1, 1], [], []>} : vector<8x4xf32>, vector<4x256xf32>, vector<8x256xf32> -> vector<8x256xf32>
    %60 = arith.addf %56, %59 : vector<8x256xf32>
    %c8 = arith.constant 8 : index
    %c0_38 = arith.constant 0 : index
    %c0_39 = arith.constant 0 : index
    %61 = vector.load %arg3[%c8, %c0_38, %c0_39] : memref<9x8x4xf32, #tpu.memory_space<vmem>>, vector<1x8x4xf32>
    %62 = vector.shape_cast %61 : vector<1x8x4xf32> to vector<8x4xf32>
    %cst_40 = arith.constant dense<0.000000e+00> : vector<8x256xf32>
    %63 = tpu.matmul %62, %52, %cst_40 {dimension_numbers = #tpu.dot_dimension_numbers<[1], [0], [0], [1], [0, 0, 1, 1], [], []>} : vector<8x4xf32>, vector<4x256xf32>, vector<8x256xf32> -> vector<8x256xf32>
    %64 = arith.addf %60, %63 : vector<8x256xf32>
    %c0_41 = arith.constant 0 : index
    %c0_42 = arith.constant 0 : index
    %65 = vector.load %arg5[%c0_41, %c0_42] : memref<8x1xf32, #tpu.memory_space<vmem>>, vector<8x1xf32>
    %66 = vector.broadcast %65 : vector<8x1xf32> to vector<8x256xf32>
    %67 = arith.mulf %64, %66 : vector<8x256xf32>
    %c0_43 = arith.constant 0 : index
    %c0_44 = arith.constant 0 : index
    %68 = vector.load %arg6[%c0_43, %c0_44] : memref<8x1xf32, #tpu.memory_space<vmem>>, vector<8x1xf32>
    %69 = vector.broadcast %68 : vector<8x1xf32> to vector<8x256xf32>
    %70 = arith.addf %67, %69 : vector<8x256xf32>
    %cst_45 = arith.constant 0.000000e+00 : f32
    %71 = vector.broadcast %cst_45 : f32 to vector<8x256xf32>
    %72 = arith.maximumf %70, %71 : vector<8x256xf32>
    %c0_46 = arith.constant 0 : index
    %c0_47 = arith.constant 0 : index
    %c0_48 = arith.constant 0 : index
    %73 = vector.load %arg7[%c0_46, %c0_47, %c0_48] : memref<1x8x256xf32, #tpu.memory_space<vmem>>, vector<1x8x256xf32>
    %74 = vector.shape_cast %73 : vector<1x8x256xf32> to vector<8x256xf32>
    %75 = vector.shape_cast %72 : vector<8x256xf32> to vector<1x8x256xf32>
    tpu.vector_store %arg7[%c0_46, %c0_47, %c0_48], %75 {strides = array<i32>} : memref<1x8x256xf32, #tpu.memory_space<vmem>>, vector<1x8x256xf32>,
    return
  }
  func.func @transform_0(%arg0: i32, %arg1: i32) -> (i32, i32, i32) {
    %c0_i32 = arith.constant 0 : i32
    %c0_i32_0 = arith.constant 0 : i32
    return %arg0, %c0_i32, %arg1 : i32, i32, i32
  }
  func.func @transform_1(%arg0: i32, %arg1: i32) -> (i32, i32, i32) {
    %c0_i32 = arith.constant 0 : i32
    %c0_i32_0 = arith.constant 0 : i32
    %c0_i32_1 = arith.constant 0 : i32
    %c0_i32_2 = arith.constant 0 : i32
    return %c0_i32, %c0_i32_0, %c0_i32_1 : i32, i32, i32
  }
  func.func @transform_2(%arg0: i32, %arg1: i32) -> (i32, i32) {
    %c0_i32 = arith.constant 0 : i32
    %c0_i32_0 = arith.constant 0 : i32
    %c0_i32_1 = arith.constant 0 : i32
    return %c0_i32, %c0_i32_0 : i32, i32
  }
  func.func @transform_3(%arg0: i32, %arg1: i32) -> (i32, i32) {
    %c0_i32 = arith.constant 0 : i32
    %c0_i32_0 = arith.constant 0 : i32
    %c0_i32_1 = arith.constant 0 : i32
    return %c0_i32, %c0_i32_0 : i32, i32
  }
  func.func @transform_4(%arg0: i32, %arg1: i32) -> (i32, i32) {
    %c0_i32 = arith.constant 0 : i32
    %c0_i32_0 = arith.constant 0 : i32
    %c0_i32_1 = arith.constant 0 : i32
    return %c0_i32, %c0_i32_0 : i32, i32
  }
  func.func @transform_5(%arg0: i32, %arg1: i32) -> (i32, i32, i32) {
    %c0_i32 = arith.constant 0 : i32
    %c0_i32_0 = arith.constant 0 : i32
    return %arg0, %c0_i32, %arg1 : i32, i32, i32
  }
}

module attributes {stable_mosaic.version = 11 : i64} {
  func.func @_stats_kernel(%arg0: i32, %arg1: i32, %arg2: memref<1x4x256xf32, #tpu.memory_space<vmem>>, %arg3: memref<9x8x4xf32, #tpu.memory_space<vmem>>, %arg4: memref<8x256xf32, #tpu.memory_space<vmem>>, %arg5: memref<1x1x8x2xf32, #tpu.memory_space<vmem>>) attributes {dimension_semantics = [#tpu.dimension_semantics<parallel>, #tpu.dimension_semantics<parallel>], iteration_bounds = array<i64: 2, 1>, scalar_prefetch = 0 : i64, scratch_operands = 0 : i64, tpu.core_type = #tpu.core_type<tc>, window_params = [{transform_indices = @transform_0, window_bounds = array<i64: 1, 4, 256>}, {pipeline_mode = #tpu.pipeline_mode<synchronous>, transform_indices = @transform_1, window_bounds = array<i64: 9, 8, 4>}, {pipeline_mode = #tpu.pipeline_mode<synchronous>, transform_indices = @transform_2, window_bounds = array<i64: 8, 256>}, {transform_indices = @transform_3, window_bounds = array<i64: 1, 1, 8, 2>}]} {
    %c0 = arith.constant 0 : index
    %c0_0 = arith.constant 0 : index
    %c0_1 = arith.constant 0 : index
    %0 = vector.load %arg2[%c0, %c0_0, %c0_1] : memref<1x4x256xf32, #tpu.memory_space<vmem>>, vector<1x4x256xf32>
    %1 = vector.shape_cast %0 : vector<1x4x256xf32> to vector<4x256xf32>
    %c0_2 = arith.constant 0 : index
    %c0_3 = arith.constant 0 : index
    %2 = vector.load %arg4[%c0_2, %c0_3] : memref<8x256xf32, #tpu.memory_space<vmem>>, vector<1x256xf32>
    %c1 = arith.constant 1 : index
    %c0_4 = arith.constant 0 : index
    %3 = vector.load %arg4[%c1, %c0_4] : memref<8x256xf32, #tpu.memory_space<vmem>>, vector<1x256xf32>
    %c3 = arith.constant 3 : index
    %c0_5 = arith.constant 0 : index
    %4 = vector.load %arg4[%c3, %c0_5] : memref<8x256xf32, #tpu.memory_space<vmem>>, vector<1x256xf32>
    %c5 = arith.constant 5 : index
    %c0_6 = arith.constant 0 : index
    %5 = vector.load %arg4[%c5, %c0_6] : memref<8x256xf32, #tpu.memory_space<vmem>>, vector<1x256xf32>
    %c16_i32 = arith.constant 16 : i32
    %6 = tpu.dynamic_rotate %1 by %c16_i32 dim 1 : vector<4x256xf32>, i32 -> vector<4x256xf32>
    %7 = vector.broadcast %4 : vector<1x256xf32> to vector<4x256xf32>
    %8 = arith.mulf %6, %7 : vector<4x256xf32>
    %c240_i32 = arith.constant 240 : i32
    %9 = tpu.dynamic_rotate %1 by %c240_i32 dim 1 : vector<4x256xf32>, i32 -> vector<4x256xf32>
    %10 = vector.broadcast %5 : vector<1x256xf32> to vector<4x256xf32>
    %11 = arith.mulf %9, %10 : vector<4x256xf32>
    %c1_i32 = arith.constant 1 : i32
    %12 = tpu.dynamic_rotate %8 by %c1_i32 dim 1 : vector<4x256xf32>, i32 -> vector<4x256xf32>
    %13 = vector.broadcast %2 : vector<1x256xf32> to vector<4x256xf32>
    %14 = arith.mulf %12, %13 : vector<4x256xf32>
    %c255_i32 = arith.constant 255 : i32
    %15 = tpu.dynamic_rotate %8 by %c255_i32 dim 1 : vector<4x256xf32>, i32 -> vector<4x256xf32>
    %16 = vector.broadcast %3 : vector<1x256xf32> to vector<4x256xf32>
    %17 = arith.mulf %15, %16 : vector<4x256xf32>
    %c0_7 = arith.constant 0 : index
    %c0_8 = arith.constant 0 : index
    %c0_9 = arith.constant 0 : index
    %18 = vector.load %arg3[%c0_7, %c0_8, %c0_9] : memref<9x8x4xf32, #tpu.memory_space<vmem>>, vector<1x8x4xf32>
    %19 = vector.shape_cast %18 : vector<1x8x4xf32> to vector<8x4xf32>
    %cst = arith.constant dense<0.000000e+00> : vector<8x256xf32>
    %20 = tpu.matmul %19, %14, %cst {dimension_numbers = #tpu.dot_dimension_numbers<[1], [0], [0], [1], [0, 0, 1, 1], [], []>} : vector<8x4xf32>, vector<4x256xf32>, vector<8x256xf32> -> vector<8x256xf32>
    %c1_10 = arith.constant 1 : index
    %c0_11 = arith.constant 0 : index
    %c0_12 = arith.constant 0 : index
    %21 = vector.load %arg3[%c1_10, %c0_11, %c0_12] : memref<9x8x4xf32, #tpu.memory_space<vmem>>, vector<1x8x4xf32>
    %22 = vector.shape_cast %21 : vector<1x8x4xf32> to vector<8x4xf32>
    %cst_13 = arith.constant dense<0.000000e+00> : vector<8x256xf32>
    %23 = tpu.matmul %22, %8, %cst_13 {dimension_numbers = #tpu.dot_dimension_numbers<[1], [0], [0], [1], [0, 0, 1, 1], [], []>} : vector<8x4xf32>, vector<4x256xf32>, vector<8x256xf32> -> vector<8x256xf32>
    %24 = arith.addf %20, %23 : vector<8x256xf32>
    %c2 = arith.constant 2 : index
    %c0_14 = arith.constant 0 : index
    %c0_15 = arith.constant 0 : index
    %25 = vector.load %arg3[%c2, %c0_14, %c0_15] : memref<9x8x4xf32, #tpu.memory_space<vmem>>, vector<1x8x4xf32>
    %26 = vector.shape_cast %25 : vector<1x8x4xf32> to vector<8x4xf32>
    %cst_16 = arith.constant dense<0.000000e+00> : vector<8x256xf32>
    %27 = tpu.matmul %26, %17, %cst_16 {dimension_numbers = #tpu.dot_dimension_numbers<[1], [0], [0], [1], [0, 0, 1, 1], [], []>} : vector<8x4xf32>, vector<4x256xf32>, vector<8x256xf32> -> vector<8x256xf32>
    %28 = arith.addf %24, %27 : vector<8x256xf32>
    %c1_i32_17 = arith.constant 1 : i32
    %29 = tpu.dynamic_rotate %1 by %c1_i32_17 dim 1 : vector<4x256xf32>, i32 -> vector<4x256xf32>
    %30 = vector.broadcast %2 : vector<1x256xf32> to vector<4x256xf32>
    %31 = arith.mulf %29, %30 : vector<4x256xf32>
    %c255_i32_18 = arith.constant 255 : i32
    %32 = tpu.dynamic_rotate %1 by %c255_i32_18 dim 1 : vector<4x256xf32>, i32 -> vector<4x256xf32>
    %33 = vector.broadcast %3 : vector<1x256xf32> to vector<4x256xf32>
    %34 = arith.mulf %32, %33 : vector<4x256xf32>
    %c3_19 = arith.constant 3 : index
    %c0_20 = arith.constant 0 : index
    %c0_21 = arith.constant 0 : index
    %35 = vector.load %arg3[%c3_19, %c0_20, %c0_21] : memref<9x8x4xf32, #tpu.memory_space<vmem>>, vector<1x8x4xf32>
    %36 = vector.shape_cast %35 : vector<1x8x4xf32> to vector<8x4xf32>
    %cst_22 = arith.constant dense<0.000000e+00> : vector<8x256xf32>
    %37 = tpu.matmul %36, %31, %cst_22 {dimension_numbers = #tpu.dot_dimension_numbers<[1], [0], [0], [1], [0, 0, 1, 1], [], []>} : vector<8x4xf32>, vector<4x256xf32>, vector<8x256xf32> -> vector<8x256xf32>
    %38 = arith.addf %28, %37 : vector<8x256xf32>
    %c4 = arith.constant 4 : index
    %c0_23 = arith.constant 0 : index
    %c0_24 = arith.constant 0 : index
    %39 = vector.load %arg3[%c4, %c0_23, %c0_24] : memref<9x8x4xf32, #tpu.memory_space<vmem>>, vector<1x8x4xf32>
    %40 = vector.shape_cast %39 : vector<1x8x4xf32> to vector<8x4xf32>
    %cst_25 = arith.constant dense<0.000000e+00> : vector<8x256xf32>
    %41 = tpu.matmul %40, %1, %cst_25 {dimension_numbers = #tpu.dot_dimension_numbers<[1], [0], [0], [1], [0, 0, 1, 1], [], []>} : vector<8x4xf32>, vector<4x256xf32>, vector<8x256xf32> -> vector<8x256xf32>
    %42 = arith.addf %38, %41 : vector<8x256xf32>
    %c5_26 = arith.constant 5 : index
    %c0_27 = arith.constant 0 : index
    %c0_28 = arith.constant 0 : index
    %43 = vector.load %arg3[%c5_26, %c0_27, %c0_28] : memref<9x8x4xf32, #tpu.memory_space<vmem>>, vector<1x8x4xf32>
    %44 = vector.shape_cast %43 : vector<1x8x4xf32> to vector<8x4xf32>
    %cst_29 = arith.constant dense<0.000000e+00> : vector<8x256xf32>
    %45 = tpu.matmul %44, %34, %cst_29 {dimension_numbers = #tpu.dot_dimension_numbers<[1], [0], [0], [1], [0, 0, 1, 1], [], []>} : vector<8x4xf32>, vector<4x256xf32>, vector<8x256xf32> -> vector<8x256xf32>
    %46 = arith.addf %42, %45 : vector<8x256xf32>
    %c1_i32_30 = arith.constant 1 : i32
    %47 = tpu.dynamic_rotate %11 by %c1_i32_30 dim 1 : vector<4x256xf32>, i32 -> vector<4x256xf32>
    %48 = vector.broadcast %2 : vector<1x256xf32> to vector<4x256xf32>
    %49 = arith.mulf %47, %48 : vector<4x256xf32>
    %c255_i32_31 = arith.constant 255 : i32
    %50 = tpu.dynamic_rotate %11 by %c255_i32_31 dim 1 : vector<4x256xf32>, i32 -> vector<4x256xf32>
    %51 = vector.broadcast %3 : vector<1x256xf32> to vector<4x256xf32>
    %52 = arith.mulf %50, %51 : vector<4x256xf32>
    %c6 = arith.constant 6 : index
    %c0_32 = arith.constant 0 : index
    %c0_33 = arith.constant 0 : index
    %53 = vector.load %arg3[%c6, %c0_32, %c0_33] : memref<9x8x4xf32, #tpu.memory_space<vmem>>, vector<1x8x4xf32>
    %54 = vector.shape_cast %53 : vector<1x8x4xf32> to vector<8x4xf32>
    %cst_34 = arith.constant dense<0.000000e+00> : vector<8x256xf32>
    %55 = tpu.matmul %54, %49, %cst_34 {dimension_numbers = #tpu.dot_dimension_numbers<[1], [0], [0], [1], [0, 0, 1, 1], [], []>} : vector<8x4xf32>, vector<4x256xf32>, vector<8x256xf32> -> vector<8x256xf32>
    %56 = arith.addf %46, %55 : vector<8x256xf32>
    %c7 = arith.constant 7 : index
    %c0_35 = arith.constant 0 : index
    %c0_36 = arith.constant 0 : index
    %57 = vector.load %arg3[%c7, %c0_35, %c0_36] : memref<9x8x4xf32, #tpu.memory_space<vmem>>, vector<1x8x4xf32>
    %58 = vector.shape_cast %57 : vector<1x8x4xf32> to vector<8x4xf32>
    %cst_37 = arith.constant dense<0.000000e+00> : vector<8x256xf32>
    %59 = tpu.matmul %58, %11, %cst_37 {dimension_numbers = #tpu.dot_dimension_numbers<[1], [0], [0], [1], [0, 0, 1, 1], [], []>} : vector<8x4xf32>, vector<4x256xf32>, vector<8x256xf32> -> vector<8x256xf32>
    %60 = arith.addf %56, %59 : vector<8x256xf32>
    %c8 = arith.constant 8 : index
    %c0_38 = arith.constant 0 : index
    %c0_39 = arith.constant 0 : index
    %61 = vector.load %arg3[%c8, %c0_38, %c0_39] : memref<9x8x4xf32, #tpu.memory_space<vmem>>, vector<1x8x4xf32>
    %62 = vector.shape_cast %61 : vector<1x8x4xf32> to vector<8x4xf32>
    %cst_40 = arith.constant dense<0.000000e+00> : vector<8x256xf32>
    %63 = tpu.matmul %62, %52, %cst_40 {dimension_numbers = #tpu.dot_dimension_numbers<[1], [0], [0], [1], [0, 0, 1, 1], [], []>} : vector<8x4xf32>, vector<4x256xf32>, vector<8x256xf32> -> vector<8x256xf32>
    %64 = arith.addf %60, %63 : vector<8x256xf32>
    %cst_41 = arith.constant 1.000000e+00 : f32
    %65 = vector.broadcast %cst_41 : f32 to vector<256x1xf32>
    %cst_42 = arith.constant dense<0.000000e+00> : vector<8x1xf32>
    %66 = tpu.matmul %64, %65, %cst_42 {dimension_numbers = #tpu.dot_dimension_numbers<[1], [0], [0], [1], [0, 0, 1, 1], [], []>} : vector<8x256xf32>, vector<256x1xf32>, vector<8x1xf32> -> vector<8x1xf32>
    %cst_43 = arith.constant 3.906250e-03 : f32
    %67 = vector.broadcast %cst_43 : f32 to vector<8x1xf32>
    %68 = arith.mulf %66, %67 : vector<8x1xf32>
    %69 = vector.broadcast %68 : vector<8x1xf32> to vector<8x256xf32>
    %70 = arith.subf %64, %69 : vector<8x256xf32>
    %71 = arith.mulf %70, %70 : vector<8x256xf32>
    %cst_44 = arith.constant dense<0.000000e+00> : vector<8x1xf32>
    %72 = tpu.matmul %71, %65, %cst_44 {dimension_numbers = #tpu.dot_dimension_numbers<[1], [0], [0], [1], [0, 0, 1, 1], [], []>} : vector<8x256xf32>, vector<256x1xf32>, vector<8x1xf32> -> vector<8x1xf32>
    %73 = tpu.concatenate %66, %72 in 1 : vector<8x1xf32>, vector<8x1xf32> -> vector<8x2xf32>
    %c0_45 = arith.constant 0 : index
    %c0_46 = arith.constant 0 : index
    %c0_47 = arith.constant 0 : index
    %c0_48 = arith.constant 0 : index
    %74 = vector.load %arg5[%c0_45, %c0_46, %c0_47, %c0_48] : memref<1x1x8x2xf32, #tpu.memory_space<vmem>>, vector<1x1x8x2xf32>
    %75 = vector.shape_cast %74 : vector<1x1x8x2xf32> to vector<8x2xf32>
    %76 = vector.shape_cast %73 : vector<8x2xf32> to vector<1x1x8x2xf32>
    tpu.vector_store %arg5[%c0_45, %c0_46, %c0_47, %c0_48], %76 {strides = array<i32>} : memref<1x1x8x2xf32, #tpu.memory_space<vmem>>, vector<1x1x8x2xf32>,
    return
  }
  func.func @transform_0(%arg0: i32, %arg1: i32) -> (i32, i32, i32) {
    %c0_i32 = arith.constant 0 : i32
    %c0_i32_0 = arith.constant 0 : i32
    return %arg0, %c0_i32, %arg1 : i32, i32, i32
  }
  func.func @transform_1(%arg0: i32, %arg1: i32) -> (i32, i32, i32) {
    %c0_i32 = arith.constant 0 : i32
    %c0_i32_0 = arith.constant 0 : i32
    %c0_i32_1 = arith.constant 0 : i32
    %c0_i32_2 = arith.constant 0 : i32
    return %c0_i32, %c0_i32_0, %c0_i32_1 : i32, i32, i32
  }
  func.func @transform_2(%arg0: i32, %arg1: i32) -> (i32, i32) {
    %c0_i32 = arith.constant 0 : i32
    %c0_i32_0 = arith.constant 0 : i32
    %c0_i32_1 = arith.constant 0 : i32
    return %c0_i32, %c0_i32_0 : i32, i32
  }
  func.func @transform_3(%arg0: i32, %arg1: i32) -> (i32, i32, i32, i32) {
    %c0_i32 = arith.constant 0 : i32
    %c0_i32_0 = arith.constant 0 : i32
    %c0_i32_1 = arith.constant 0 : i32
    return %arg0, %arg1, %c0_i32, %c0_i32_0 : i32, i32, i32, i32
  }
}

</mosaic_0001>

<llo_original>
// kernel: single_conv.2
$region0: #{single_conv.2}
  #allocation0 [shape = 'u32[]', space=smem, size = 0x4, offset = 0x4, fixed_abs, tag = 'smem constant byte address 0x4 - core index']
  #allocation1 [shape = 'u32[144,128]{1,0:T(1,128)}', space=vmem, size = 0x12000, scoped, tag = 'internal scratch']
  %s0 = inlined_call_operand.vmem [shape: f32[2,4,256], index: 0, kind: input, shape index: {}]
  %s1 = inlined_call_operand.vmem [shape: f32[9,8,4], index: 1, kind: input, shape index: {}]
  %s2 = inlined_call_operand.vmem [shape: f32[8,256], index: 2, kind: input, shape index: {}]
  %s3 = inlined_call_operand.vmem [shape: f32[2,1,8,2], index: 3, kind: output, shape index: {}]
  %s4 = sld [smem:[#allocation0]]
  $region45: #{single_conv.2} parent=0
    _
  %s6 = ssub.s32 1, %s4
  %s7 = scalar_select 0, %s6, %s4
  loop: start=0, step=1, limit=4
  $region2: #{single_conv.2} parent=0 // loop_pre_header
    _
  $region3: #{single_conv.2} parent=0 // loop_header
    %s9 = sphi 0, %s13
    %p10 = scmp.ge.s32.totalorder %s9, 4
    %s16 = sphi 0, %s28
    %s17 = sphi 0, %s24
    %s18 = sphi 0, %s16
    %s19 = sphi 0, %s17
    %s20 = sphi 0, %s18
    %s21 = sphi 0, %s19
    %s33 = sphi 0, %s35
    %s36 = sphi 0, %s33
    %s37 = sphi 0, %s36
    %s53 = sphi 0, %s37
    %s57 = sphi 0, %s57
    %s59 = sphi 0, %s57
    %s60 = sphi 0, %s59
    %s74 = sphi 0, %s60
    %s78 = sphi 0, %s78
    %s80 = sphi 0, %s78
    %s81 = sphi 0, %s80
    %s95 = sphi 0, %s81
    %s103 = sphi 0, %s105
    %s106 = sphi 0, %s103
    %s107 = sphi 0, %s106
    %s123 = sphi 0, %s107
  $region4: #{single_conv.2} parent=0 // loop_header_branch
    %12 = sbr.rel (%p10) target = $region8
  $region5: #{single_conv.2} parent=0 // loop_body
    %s14 = ssub.s32 %s9, 1
    %s15 = ssub.s32 %s9, 2
    %s22 = sadd.s32 1, %s17
    %p23 = scmp.ge.s32.totalorder %s22, 1
    %s24 = scalar_select %p23, 0, %s22
    %s25 = sadd.s32 1, %s16
    %s26 = scalar_select %p23, %s25, %s16
    %p27 = scmp.ge.s32.totalorder %s26, 2
    %s28 = scalar_select %p27, 0, %s26
    %s29 = ssub.s32 %s16, %s28
    %s30 = ssub.s32 %s17, %s24
    %s31 = sor.u32 %s29, %s30
    %p32 = scmp.eq.s32.totalorder %s31, 0
    %s34 = sadd.s32 %s33, 1
    %s35 = scalar_select %p32, %s33, %s34
    %p38 = pneg %p32
    %p39 = scmp.eq.s32.totalorder %s9, 1
    %p40 = por %p38, %p39
    %p41 = scmp.ne.s32.totalorder %s33, %s36
    %p42 = scmp.eq.s32.totalorder %s9, 0
    %p43 = por %p41, %p42
    %p44 = scmp.ne.s32.totalorder %s33, %s36
    %p45 = scmp.eq.s32.totalorder %s14, 1
    %p46 = por %p44, %p45
    %p47 = scmp.ne.s32.totalorder %s36, %s37
    %p48 = scmp.eq.s32.totalorder %s14, 0
    %p49 = por %p47, %p48
    %p50 = scmp.ne.s32.totalorder %s36, %s37
    %p51 = scmp.eq.s32.totalorder %s15, 1
    %p52 = por %p50, %p51
    %p54 = scmp.ne.s32.totalorder %s37, %s53
    %p55 = scmp.eq.s32.totalorder %s15, 0
    %p56 = por %p54, %p55
    %s58 = sadd.s32 %s57, 1
    %p61 = scmp.eq.s32.totalorder %s9, 1
    %p62 = scmp.ne.s32.totalorder %s57, %s59
    %p63 = scmp.eq.s32.totalorder %s9, 0
    %p64 = por %p62, %p63
    %p65 = scmp.ne.s32.totalorder %s57, %s59
    %p66 = scmp.eq.s32.totalorder %s14, 1
    %p67 = por %p65, %p66
    %p68 = scmp.ne.s32.totalorder %s59, %s60
    %p69 = scmp.eq.s32.totalorder %s14, 0
    %p70 = por %p68, %p69
    %p71 = scmp.ne.s32.totalorder %s59, %s60
    %p72 = scmp.eq.s32.totalorder %s15, 1
    %p73 = por %p71, %p72
    %p75 = scmp.ne.s32.totalorder %s60, %s74
    %p76 = scmp.eq.s32.totalorder %s15, 0
    %p77 = por %p75, %p76
    %s79 = sadd.s32 %s78, 1
    %p82 = scmp.eq.s32.totalorder %s9, 1
    %p83 = scmp.ne.s32.totalorder %s78, %s80
    %p84 = scmp.eq.s32.totalorder %s9, 0
    %p85 = por %p83, %p84
    %p86 = scmp.ne.s32.totalorder %s78, %s80
    %p87 = scmp.eq.s32.totalorder %s14, 1
    %p88 = por %p86, %p87
    %p89 = scmp.ne.s32.totalorder %s80, %s81
    %p90 = scmp.eq.s32.totalorder %s14, 0
    %p91 = por %p89, %p90
    %p92 = scmp.ne.s32.totalorder %s80, %s81
    %p93 = scmp.eq.s32.totalorder %s15, 1
    %p94 = por %p92, %p93
    %p96 = scmp.ne.s32.totalorder %s81, %s95
    %p97 = scmp.eq.s32.totalorder %s15, 0
    %p98 = por %p96, %p97
    %s99 = ssub.s32 %s16, %s28
    %s100 = ssub.s32 %s17, %s24
    %s101 = sor.u32 %s99, %s100
    %p102 = scmp.eq.s32.totalorder %s101, 0
    %s104 = sadd.s32 %s103, 1
    %s105 = scalar_select %p102, %s103, %s104
    %p108 = pneg %p102
    %p109 = scmp.eq.s32.totalorder %s9, 1
    %p110 = por %p108, %p109
    %p111 = scmp.ne.s32.totalorder %s103, %s106
    %p112 = scmp.eq.s32.totalorder %s9, 0
    %p113 = por %p111, %p112
    %p114 = scmp.ne.s32.totalorder %s103, %s106
    %p115 = scmp.eq.s32.totalorder %s14, 1
    %p116 = por %p114, %p115
    %p117 = scmp.ne.s32.totalorder %s106, %s107
    %p118 = scmp.eq.s32.totalorder %s14, 0
    %p119 = por %p117, %p118
    %p120 = scmp.ne.s32.totalorder %s106, %s107
    %p121 = scmp.eq.s32.totalorder %s15, 1
    %p122 = por %p120, %p121
    %p124 = scmp.ne.s32.totalorder %s107, %s123
    %p125 = scmp.eq.s32.totalorder %s15, 0
    %p126 = por %p124, %p125
    %p127 = scmp.le.s32.totalorder 1, %s9
    %p128 = scmp.lt.s32.totalorder %s9, 3
    %p129 = pnand %p127, %p128
    %p130 = pneg %p129
    // Predicated region
    $region9: #{single_conv.2} parent=5 // pred_check
      _
    $region10: #{single_conv.2} parent=5 // pred_check_branch
      %132 = sbr.rel (%p129) target = $region12
    $region11: #{single_conv.2} parent=5 // pred_region
      %s133 = ssub.s32 %s9, 1
      // Predicated region
      $region13: #{single_conv.2} parent=11 // pred_check
        %p134 = pneg %p70
      $region14: #{single_conv.2} parent=11 // pred_check_branch
        %136 = sbr.rel (%p134) target = $region16
      $region15: #{single_conv.2} parent=11 // pred_region
        _
      $region16: #{single_conv.2} parent=11 // pred_fallthru
        _
      // Predicated region
      $region17: #{single_conv.2} parent=11 // pred_check
        %p137 = pneg %p91
      $region18: #{single_conv.2} parent=11 // pred_check_branch
        %139 = sbr.rel (%p137) target = $region20
      $region19: #{single_conv.2} parent=11 // pred_region
        _
      $region20: #{single_conv.2} parent=11 // pred_fallthru
        _
    $region12: #{single_conv.2} parent=5 // pred_fallthru
      _
    %p140 = scmp.lt.s32.totalorder %s9, 2
    // Predicated region
    $region21: #{single_conv.2} parent=5 // pred_check
      %p141 = pneg %p140
    $region22: #{single_conv.2} parent=5 // pred_check_branch
      %143 = sbr.rel (%p141) target = $region24
    $region23: #{single_conv.2} parent=5 // pred_region
      // Predicated region
      $region25: #{single_conv.2} parent=23 // pred_check
        %p144 = pneg %p43
      $region26: #{single_conv.2} parent=23 // pred_check_branch
        %146 = sbr.rel (%p144) target = $region28
      $region27: #{single_conv.2} parent=23 // pred_region
        %s147 = smul.u32 2, %s17
        %p148 = scmp.lt.s32.totalorder %s16, 1
        %s149 = scalar_select %p148, %s16, 1
        %p150 = scmp.lt.s32.totalorder %s147, 1
        %s151 = scalar_select %p150, %s147, 1
        %s152 = smul.addr %s149, 2
        %s153 = sadd.s32 %s151, %s152
        %s154 = smul.addr %s153, 4
        %s155 = scalar_lea.vmem %s0, %s154
        %s156 = smul.u32 2, %s17
      $region28: #{single_conv.2} parent=23 // pred_fallthru
        _
    $region24: #{single_conv.2} parent=5 // pred_fallthru
      _
    %p157 = scmp.le.s32.totalorder 1, %s9
    %p158 = scmp.lt.s32.totalorder %s9, 3
    %p159 = pnand %p157, %p158
    %p160 = pneg %p159
    // Predicated region
    $region29: #{single_conv.2} parent=5 // pred_check
      _
    $region30: #{single_conv.2} parent=5 // pred_check_branch
      %162 = sbr.rel (%p159) target = $region32
    $region31: #{single_conv.2} parent=5 // pred_region
      %s163 = ssub.s32 %s9, 1
      %s164 = smul.u32 2, %s19
      %p165 = scmp.lt.s32.totalorder %s18, 1
      %s166 = scalar_select %p165, %s18, 1
      %p167 = scmp.lt.s32.totalorder %s164, 1
      %s168 = scalar_select %p167, %s164, 1
      %s169 = smul.addr %s166, 2
      %s170 = sadd.s32 %s168, %s169
      %s171 = smul.addr %s170, 4
      %s172 = scalar_lea.vmem %s0, %s171
      %p173 = pneg %p49
      %p174 = pneg %p46
      %p175 = pneg %p70
      %p176 = pneg %p67
      %p177 = pneg %p91
      %p178 = pneg %p88
      %p179 = pneg %p119
      %p180 = pneg %p116
      %p181 = scmp.lt.s32.totalorder %s18, 1
      %s182 = scalar_select %p181, %s18, 1
      %p183 = scmp.lt.s32.totalorder %s19, 0
      %s184 = scalar_select %p183, %s19, 0
      %s185 = sadd.s32 %s184, %s182
      %s186 = smul.addr %s185, 8
      %s187 = scalar_lea.vmem %s3, %s186
      %s188 = smul.u32 2, %s19
      %p189 = scmp.lt.s32.totalorder %s18, 1
      %s190 = scalar_select %p189, %s18, 1
      %p191 = scmp.lt.s32.totalorder %s188, 1
      %s192 = scalar_select %p191, %s188, 1
      %s193 = smul.addr %s190, 2
      %s194 = sadd.s32 %s192, %s193
      %s195 = smul.addr %s194, 4
      %s196 = scalar_lea.vmem %s0, %s195
      %s197 = smul.u32 2, %s19
      %p198 = scmp.lt.s32.totalorder %s18, 1
      %s199 = scalar_select %p198, %s18, 1
      %p200 = scmp.lt.s32.totalorder %s19, 0
      %s201 = scalar_select %p200, %s19, 0
      %s202 = sadd.s32 %s201, %s199
      %s203 = smul.addr %s202, 8
      %s204 = scalar_lea.vmem %s3, %s203
      %v205 = vld [vmem:[%s196] sm:$0xff]
      %v206 = vld [vmem:[%s2] ss:$8 sm:$0x3]
      %s207 = scalar_lea.vmem %s2, 1
      %v208 = vld [vmem:[%s207] ss:$8 sm:$0x3]
      %s209 = scalar_lea.vmem %s2, 3
      %v210 = vld [vmem:[%s209] ss:$8 sm:$0x3]
      %s211 = scalar_lea.vmem %s2, 5
      %v212 = vld [vmem:[%s211] ss:$8 sm:$0x3]
      %v214 = vcombine.high %v205, %v205
      %216 = vrot.lane.b32.xlu0 %v205, 16
      %v217 = vpop.permute.xlu0 %216
      %218 = vrot.lane.b32.xlu0 %v214, 16
      %v219 = vpop.permute.xlu0 %218
      %v220 = vlaneseq
      %v221 = vand.u32 %v220, 127
      %vm222 = vcmp.lt.s32.totalorder %v221, 16
      %v223 = vsel %vm222, %v217, %v219
      %v224 = vsel %vm222, %v219, %v217
      %v226 = vlaneseq
      %v227 = vshrl.u32 %v226, 7
      %v228 = vsub.s32 0, %v227
      %v229 = vrot.slane %v210, %v228
      %v230 = vlaneseq
      %v231 = vshrl.u32 %v230, 7
      %v232 = vsub.s32 1, %v231
      %v233 = vrot.slane %v210, %v232
      %v236 = vmul.f32 %v224, %v229
      %v237 = vmul.f32 %v223, %v233
      %238 = vrot.lane.b32.xlu0 %v205, 112
      %v239 = vpop.permute.xlu0 %238
      %240 = vrot.lane.b32.xlu0 %v214, 112
      %v241 = vpop.permute.xlu0 %240
      %vm242 = vcmp.lt.s32.totalorder %v221, 112
      %v243 = vsel %vm242, %v239, %v241
      %v244 = vsel %vm242, %v241, %v239
      %v246 = vlaneseq
      %v247 = vshrl.u32 %v246, 7
      %v248 = vsub.s32 0, %v247
      %v249 = vrot.slane %v212, %v248
      %v250 = vlaneseq
      %v251 = vshrl.u32 %v250, 7
      %v252 = vsub.s32 1, %v251
      %v253 = vrot.slane %v212, %v252
      %v256 = vmul.f32 %v243, %v249
      %v257 = vmul.f32 %v244, %v253
      %258 = vrot.lane.b32.xlu0 %v236, 1
      %v259 = vpop.permute.xlu0 %258
      %260 = vrot.lane.b32.xlu0 %v237, 1
      %v261 = vpop.permute.xlu0 %260
      %vm262 = vcmp.lt.s32.totalorder %v221, 1
      %v263 = vsel %vm262, %v259, %v261
      %v264 = vsel %vm262, %v261, %v259
      %v266 = vlaneseq
      %v267 = vshrl.u32 %v266, 7
      %v268 = vsub.s32 0, %v267
      %v269 = vrot.slane %v206, %v268
      %v270 = vlaneseq
      %v271 = vshrl.u32 %v270, 7
      %v272 = vsub.s32 1, %v271
      %v273 = vrot.slane %v206, %v272
      %v276 = vmul.f32 %v264, %v269
      %v277 = vmul.f32 %v263, %v273
      %278 = vrot.lane.b32.xlu0 %v236, 127
      %v279 = vpop.permute.xlu0 %278
      %280 = vrot.lane.b32.xlu0 %v237, 127
      %v281 = vpop.permute.xlu0 %280
      %vm282 = vcmp.lt.s32.totalorder %v221, 127
      %v283 = vsel %vm282, %v279, %v281
      %v284 = vsel %vm282, %v281, %v279
      %v286 = vlaneseq
      %v287 = vshrl.u32 %v286, 7
      %v288 = vsub.s32 0, %v287
      %v289 = vrot.slane %v208, %v288
      %v290 = vlaneseq
      %v291 = vshrl.u32 %v290, 7
      %v292 = vsub.s32 1, %v291
      %v293 = vrot.slane %v208, %v292
      %v296 = vmul.f32 %v283, %v289
      %v297 = vmul.f32 %v284, %v293
      %v298 = vld [vmem:[%s1] sm:$0xff]
      %s299 = scalar_lea.vmem %s1, 8
      %v300 = vld [vmem:[%s299] sm:$0xff]
      %vm301 = vcmask 31744
      %v303 = vsel %vm301, %v300, 0
      %vm305 = vcmask 1043456
      %v307 = vsel %vm305, %v236, 0
      %v310 = vsel %vm305, %v237, 0
      %312 = vmatprep.subr.mxu0 0.0
      %313 = vmatpush1.msra.mxu0 0.0
      %314 = vmatprep.subr.mxu0 0.0
      %315 = vmatpush1.msra.mxu0 0.0
      %316 = vmatprep.subr.mxu0 0.0
      %317 = vmatpush1.msra.mxu0 0.0
      %318 = vmatprep.subr.mxu0 0.0
      %319 = vmatpush1.msra.mxu0 0.0
      %320 = vmatprep.subr.mxu0 0.0
      %321 = vmatpush1.msra.mxu0 0.0
      %322 = vmatprep.subr.mxu0 0.0
      %323 = vmatpush1.msra.mxu0 0.0
      %324 = vmatprep.subr.mxu0 0.0
      %325 = vmatpush1.msra.mxu0 0.0
      %326 = vmatprep.subr.mxu0 0.0
      %327 = vmatpush1.msra.mxu0 0.0
      %328 = vmatprep.subr.mxu0 0.0
      %329 = vmatpush1.msra.mxu0 0.0
      %330 = vmatprep.subr.mxu0 0.0
      %331 = vmatpush1.msra.mxu0 0.0
      %332 = vmatprep.subr.mxu0 0.0
      %333 = vmatpush1.msra.mxu0 0.0
      %334 = vmatprep.subr.mxu0 0.0
      %335 = vmatpush1.msra.mxu0 0.0
      %336 = vmatprep.subr.mxu0 0.0
      %337 = vmatpush1.msra.mxu0 0.0
      %338 = vmatprep.subr.mxu0 0.0
      %339 = vmatpush1.msra.mxu0 0.0
      %340 = vmatprep.subr.mxu0 0.0
      %341 = vmatpush1.msra.mxu0 0.0
      %342 = vmatprep.subr.mxu0 %v310
      %343 = vmatpush1.msra.mxu0 %v307
      %344 = vmatprep.subr.mxu0 0.0
      %345 = vmatpush2.msra.mxu0 0.0
      %346 = vmatprep.subr.mxu0 0.0
      %347 = vmatpush2.msra.mxu0 0.0
      %348 = vmatprep.subr.mxu0 0.0
      %349 = vmatpush2.msra.mxu0 0.0
      %350 = vmatprep.subr.mxu0 0.0
      %351 = vmatpush2.msra.mxu0 0.0
      %352 = vmatprep.subr.mxu0 0.0
      %353 = vmatpush2.msra.mxu0 0.0
      %354 = vmatprep.subr.mxu0 0.0
      %355 = vmatpush2.msra.mxu0 0.0
      %356 = vmatprep.subr.mxu0 0.0
      %357 = vmatpush2.msra.mxu0 0.0
      %358 = vmatprep.subr.mxu0 0.0
      %359 = vmatpush2.msra.mxu0 0.0
      %360 = vmatprep.subr.mxu0 0.0
      %361 = vmatpush2.msra.mxu0 0.0
      %362 = vmatprep.subr.mxu0 0.0
      %363 = vmatpush2.msra.mxu0 0.0
      %364 = vmatprep.subr.mxu0 0.0
      %365 = vmatpush2.msra.mxu0 0.0
      %366 = vmatprep.subr.mxu0 0.0
      %367 = vmatpush2.msra.mxu0 0.0
      %368 = vmatprep.subr.mxu0 0.0
      %369 = vmatpush2.msra.mxu0 0.0
      %370 = vmatprep.subr.mxu0 0.0
      %371 = vmatpush2.msra.mxu0 0.0
      %372 = vmatprep.subr.mxu0 0.0
      %373 = vmatpush2.msra.mxu0 0.0
      %374 = vmatprep.subr.mxu0 0.0
      %375 = vmatpush2.msra.mxu0 0.0
      %376 = vmatprep.mubr.f32.mxu0 0.0
      %377 = vmatmul.mubr.f32.gmra.mxu0 %v303
      %v378 = vpop.f32.mrf.mxu0
      %v379 = vadd.f32 0.0, %v378
      %v380 = vpop.f32.mrf.mxu0
      %v381 = vadd.f32 0.0, %v380
      %382 = vdwg.mxu0
      %v384 = vsel %vm301, %v298, 0
      %v387 = vsel %vm305, %v276, 0
      %v390 = vsel %vm305, %v277, 0
      %392 = vmatprep.subr.mxu0 0.0
      %393 = vmatpush1.msra.mxu0 0.0
      %394 = vmatprep.subr.mxu0 0.0
      %395 = vmatpush1.msra.mxu0 0.0
      %396 = vmatprep.subr.mxu0 0.0
      %397 = vmatpush1.msra.mxu0 0.0
      %398 = vmatprep.subr.mxu0 0.0
      %399 = vmatpush1.msra.mxu0 0.0
      %400 = vmatprep.subr.mxu0 0.0
      %401 = vmatpush1.msra.mxu0 0.0
      %402 = vmatprep.subr.mxu0 0.0
      %403 = vmatpush1.msra.mxu0 0.0
      %404 = vmatprep.subr.mxu0 0.0
      %405 = vmatpush1.msra.mxu0 0.0
      %406 = vmatprep.subr.mxu0 0.0
      %407 = vmatpush1.msra.mxu0 0.0
      %408 = vmatprep.subr.mxu0 0.0
      %409 = vmatpush1.msra.mxu0 0.0
      %410 = vmatprep.subr.mxu0 0.0
      %411 = vmatpush1.msra.mxu0 0.0
      %412 = vmatprep.subr.mxu0 0.0
      %413 = vmatpush1.msra.mxu0 0.0
      %414 = vmatprep.subr.mxu0 0.0
      %415 = vmatpush1.msra.mxu0 0.0
      %416 = vmatprep.subr.mxu0 0.0
      %417 = vmatpush1.msra.mxu0 0.0
      %418 = vmatprep.subr.mxu0 0.0
      %419 = vmatpush1.msra.mxu0 0.0
      %420 = vmatprep.subr.mxu0 0.0
      %421 = vmatpush1.msra.mxu0 0.0
      %422 = vmatprep.subr.mxu0 %v390
      %423 = vmatpush1.msra.mxu0 %v387
      %424 = vmatprep.subr.mxu0 0.0
      %425 = vmatpush2.msra.mxu0 0.0
      %426 = vmatprep.subr.mxu0 0.0
      %427 = vmatpush2.msra.mxu0 0.0
      %428 = vmatprep.subr.mxu0 0.0
      %429 = vmatpush2.msra.mxu0 0.0
      %430 = vmatprep.subr.mxu0 0.0
      %431 = vmatpush2.msra.mxu0 0.0
      %432 = vmatprep.subr.mxu0 0.0
      %433 = vmatpush2.msra.mxu0 0.0
      %434 = vmatprep.subr.mxu0 0.0
      %435 = vmatpush2.msra.mxu0 0.0
      %436 = vmatprep.subr.mxu0 0.0
      %437 = vmatpush2.msra.mxu0 0.0
      %438 = vmatprep.subr.mxu0 0.0
      %439 = vmatpush2.msra.mxu0 0.0
      %440 = vmatprep.subr.mxu0 0.0
      %441 = vmatpush2.msra.mxu0 0.0
      %442 = vmatprep.subr.mxu0 0.0
      %443 = vmatpush2.msra.mxu0 0.0
      %444 = vmatprep.subr.mxu0 0.0
      %445 = vmatpush2.msra.mxu0 0.0
      %446 = vmatprep.subr.mxu0 0.0
      %447 = vmatpush2.msra.mxu0 0.0
      %448 = vmatprep.subr.mxu0 0.0
      %449 = vmatpush2.msra.mxu0 0.0
      %450 = vmatprep.subr.mxu0 0.0
      %451 = vmatpush2.msra.mxu0 0.0
      %452 = vmatprep.subr.mxu0 0.0
      %453 = vmatpush2.msra.mxu0 0.0
      %454 = vmatprep.subr.mxu0 0.0
      %455 = vmatpush2.msra.mxu0 0.0
      %456 = vmatprep.mubr.f32.mxu0 0.0
      %457 = vmatmul.mubr.f32.gmra.mxu0 %v384
      %v458 = vpop.f32.mrf.mxu0
      %v459 = vadd.f32 %v379, %v458
      %v460 = vpop.f32.mrf.mxu0
      %v461 = vadd.f32 %v381, %v460
      %462 = vdwg.mxu0
      %s463 = scalar_lea.vmem %s1, 16
      %v464 = vld [vmem:[%s463] sm:$0xff]
      %v466 = vsel %vm301, %v464, 0
      %v469 = vsel %vm305, %v296, 0
      %v472 = vsel %vm305, %v297, 0
      %474 = vmatprep.subr.mxu0 0.0
      %475 = vmatpush1.msra.mxu0 0.0
      %476 = vmatprep.subr.mxu0 0.0
      %477 = vmatpush1.msra.mxu0 0.0
      %478 = vmatprep.subr.mxu0 0.0
      %479 = vmatpush1.msra.mxu0 0.0
      %480 = vmatprep.subr.mxu0 0.0
      %481 = vmatpush1.msra.mxu0 0.0
      %482 = vmatprep.subr.mxu0 0.0
      %483 = vmatpush1.msra.mxu0 0.0
      %484 = vmatprep.subr.mxu0 0.0
      %485 = vmatpush1.msra.mxu0 0.0
      %486 = vmatprep.subr.mxu0 0.0
      %487 = vmatpush1.msra.mxu0 0.0
      %488 = vmatprep.subr.mxu0 0.0
      %489 = vmatpush1.msra.mxu0 0.0
      %490 = vmatprep.subr.mxu0 0.0
      %491 = vmatpush1.msra.mxu0 0.0
      %492 = vmatprep.subr.mxu0 0.0
      %493 = vmatpush1.msra.mxu0 0.0
      %494 = vmatprep.subr.mxu0 0.0
      %495 = vmatpush1.msra.mxu0 0.0
      %496 = vmatprep.subr.mxu0 0.0
      %497 = vmatpush1.msra.mxu0 0.0
      %498 = vmatprep.subr.mxu0 0.0
      %499 = vmatpush1.msra.mxu0 0.0
      %500 = vmatprep.subr.mxu0 0.0
      %501 = vmatpush1.msra.mxu0 0.0
      %502 = vmatprep.subr.mxu0 0.0
      %503 = vmatpush1.msra.mxu0 0.0
      %504 = vmatprep.subr.mxu0 %v472
      %505 = vmatpush1.msra.mxu0 %v469
      %506 = vmatprep.subr.mxu0 0.0
      %507 = vmatpush2.msra.mxu0 0.0
      %508 = vmatprep.subr.mxu0 0.0
      %509 = vmatpush2.msra.mxu0 0.0
      %510 = vmatprep.subr.mxu0 0.0
      %511 = vmatpush2.msra.mxu0 0.0
      %512 = vmatprep.subr.mxu0 0.0
      %513 = vmatpush2.msra.mxu0 0.0
      %514 = vmatprep.subr.mxu0 0.0
      %515 = vmatpush2.msra.mxu0 0.0
      %516 = vmatprep.subr.mxu0 0.0
      %517 = vmatpush2.msra.mxu0 0.0
      %518 = vmatprep.subr.mxu0 0.0
      %519 = vmatpush2.msra.mxu0 0.0
      %520 = vmatprep.subr.mxu0 0.0
      %521 = vmatpush2.msra.mxu0 0.0
      %522 = vmatprep.subr.mxu0 0.0
      %523 = vmatpush2.msra.mxu0 0.0
      %524 = vmatprep.subr.mxu0 0.0
      %525 = vmatpush2.msra.mxu0 0.0
      %526 = vmatprep.subr.mxu0 0.0
      %527 = vmatpush2.msra.mxu0 0.0
      %528 = vmatprep.subr.mxu0 0.0
      %529 = vmatpush2.msra.mxu0 0.0
      %530 = vmatprep.subr.mxu0 0.0
      %531 = vmatpush2.msra.mxu0 0.0
      %532 = vmatprep.subr.mxu0 0.0
      %533 = vmatpush2.msra.mxu0 0.0
      %534 = vmatprep.subr.mxu0 0.0
      %535 = vmatpush2.msra.mxu0 0.0
      %536 = vmatprep.subr.mxu0 0.0
      %537 = vmatpush2.msra.mxu0 0.0
      %538 = vmatprep.mubr.f32.mxu0 0.0
      %539 = vmatmul.mubr.f32.gmra.mxu0 %v466
      %v540 = vpop.f32.mrf.mxu0
      %v541 = vadd.f32 0.0, %v540
      %v542 = vpop.f32.mrf.mxu0
      %v543 = vadd.f32 0.0, %v542
      %544 = vdwg.mxu0
      %v545 = vadd.f32 %v459, %v541
      %v546 = vadd.f32 %v461, %v543
      %547 = vrot.lane.b32.xlu0 %v205, 1
      %v548 = vpop.permute.xlu0 %547
      %549 = vrot.lane.b32.xlu0 %v214, 1
      %v550 = vpop.permute.xlu0 %549
      %v551 = vsel %vm262, %v548, %v550
      %v552 = vsel %vm262, %v550, %v548
      %v553 = vmul.f32 %v552, %v269
      %v554 = vmul.f32 %v551, %v273
      %555 = vrot.lane.b32.xlu0 %v205, 127
      %v556 = vpop.permute.xlu0 %555
      %557 = vrot.lane.b32.xlu0 %v214, 127
      %v558 = vpop.permute.xlu0 %557
      %v559 = vsel %vm282, %v556, %v558
      %v560 = vsel %vm282, %v558, %v556
      %v561 = vmul.f32 %v559, %v289
      %v562 = vmul.f32 %v560, %v293
      %s563 = scalar_lea.vmem %s1, 24
      %v564 = vld [vmem:[%s563] sm:$0xff]
      %v566 = vsel %vm301, %v564, 0
      %v569 = vsel %vm305, %v553, 0
      %v572 = vsel %vm305, %v554, 0
      %574 = vmatprep.subr.mxu0 0.0
      %575 = vmatpush1.msra.mxu0 0.0
      %576 = vmatprep.subr.mxu0 0.0
      %577 = vmatpush1.msra.mxu0 0.0
      %578 = vmatprep.subr.mxu0 0.0
      %579 = vmatpush1.msra.mxu0 0.0
      %580 = vmatprep.subr.mxu0 0.0
      %581 = vmatpush1.msra.mxu0 0.0
      %582 = vmatprep.subr.mxu0 0.0
      %583 = vmatpush1.msra.mxu0 0.0
      %584 = vmatprep.subr.mxu0 0.0
      %585 = vmatpush1.msra.mxu0 0.0
      %586 = vmatprep.subr.mxu0 0.0
      %587 = vmatpush1.msra.mxu0 0.0
      %588 = vmatprep.subr.mxu0 0.0
      %589 = vmatpush1.msra.mxu0 0.0
      %590 = vmatprep.subr.mxu0 0.0
      %591 = vmatpush1.msra.mxu0 0.0
      %592 = vmatprep.subr.mxu0 0.0
      %593 = vmatpush1.msra.mxu0 0.0
      %594 = vmatprep.subr.mxu0 0.0
      %595 = vmatpush1.msra.mxu0 0.0
      %596 = vmatprep.subr.mxu0 0.0
      %597 = vmatpush1.msra.mxu0 0.0
      %598 = vmatprep.subr.mxu0 0.0
      %599 = vmatpush1.msra.mxu0 0.0
      %600 = vmatprep.subr.mxu0 0.0
      %601 = vmatpush1.msra.mxu0 0.0
      %602 = vmatprep.subr.mxu0 0.0
      %603 = vmatpush1.msra.mxu0 0.0
      %604 = vmatprep.subr.mxu0 %v572
      %605 = vmatpush1.msra.mxu0 %v569
      %606 = vmatprep.subr.mxu0 0.0
      %607 = vmatpush2.msra.mxu0 0.0
      %608 = vmatprep.subr.mxu0 0.0
      %609 = vmatpush2.msra.mxu0 0.0
      %610 = vmatprep.subr.mxu0 0.0
      %611 = vmatpush2.msra.mxu0 0.0
      %612 = vmatprep.subr.mxu0 0.0
      %613 = vmatpush2.msra.mxu0 0.0
      %614 = vmatprep.subr.mxu0 0.0
      %615 = vmatpush2.msra.mxu0 0.0
      %616 = vmatprep.subr.mxu0 0.0
      %617 = vmatpush2.msra.mxu0 0.0
      %618 = vmatprep.subr.mxu0 0.0
      %619 = vmatpush2.msra.mxu0 0.0
      %620 = vmatprep.subr.mxu0 0.0
      %621 = vmatpush2.msra.mxu0 0.0
      %622 = vmatprep.subr.mxu0 0.0
      %623 = vmatpush2.msra.mxu0 0.0
      %624 = vmatprep.subr.mxu0 0.0
      %625 = vmatpush2.msra.mxu0 0.0
      %626 = vmatprep.subr.mxu0 0.0
      %627 = vmatpush2.msra.mxu0 0.0
      %628 = vmatprep.subr.mxu0 0.0
      %629 = vmatpush2.msra.mxu0 0.0
      %630 = vmatprep.subr.mxu0 0.0
      %631 = vmatpush2.msra.mxu0 0.0
      %632 = vmatprep.subr.mxu0 0.0
      %633 = vmatpush2.msra.mxu0 0.0
      %634 = vmatprep.subr.mxu0 0.0
      %635 = vmatpush2.msra.mxu0 0.0
      %636 = vmatprep.subr.mxu0 0.0
      %637 = vmatpush2.msra.mxu0 0.0
      %638 = vmatprep.mubr.f32.mxu0 0.0
      %639 = vmatmul.mubr.f32.gmra.mxu0 %v566
      %v640 = vpop.f32.mrf.mxu0
      %v641 = vadd.f32 0.0, %v640
      %v642 = vpop.f32.mrf.mxu0
      %v643 = vadd.f32 0.0, %v642
      %644 = vdwg.mxu0
      %v645 = vadd.f32 %v545, %v641
      %v646 = vadd.f32 %v546, %v643
      %s647 = scalar_lea.vmem %s1, 32
      %v648 = vld [vmem:[%s647] sm:$0xff]
      %v650 = vsel %vm301, %v648, 0
      %v652 = vsel %vm305, %v205, 0
      %v654 = vsel %vm305, %v214, 0
      %656 = vmatprep.subr.mxu0 0.0
      %657 = vmatpush1.msra.mxu0 0.0
      %658 = vmatprep.subr.mxu0 0.0
      %659 = vmatpush1.msra.mxu0 0.0
      %660 = vmatprep.subr.mxu0 0.0
      %661 = vmatpush1.msra.mxu0 0.0
      %662 = vmatprep.subr.mxu0 0.0
      %663 = vmatpush1.msra.mxu0 0.0
      %664 = vmatprep.subr.mxu0 0.0
      %665 = vmatpush1.msra.mxu0 0.0
      %666 = vmatprep.subr.mxu0 0.0
      %667 = vmatpush1.msra.mxu0 0.0
      %668 = vmatprep.subr.mxu0 0.0
      %669 = vmatpush1.msra.mxu0 0.0
      %670 = vmatprep.subr.mxu0 0.0
      %671 = vmatpush1.msra.mxu0 0.0
      %672 = vmatprep.subr.mxu0 0.0
      %673 = vmatpush1.msra.mxu0 0.0
      %674 = vmatprep.subr.mxu0 0.0
      %675 = vmatpush1.msra.mxu0 0.0
      %676 = vmatprep.subr.mxu0 0.0
      %677 = vmatpush1.msra.mxu0 0.0
      %678 = vmatprep.subr.mxu0 0.0
      %679 = vmatpush1.msra.mxu0 0.0
      %680 = vmatprep.subr.mxu0 0.0
      %681 = vmatpush1.msra.mxu0 0.0
      %682 = vmatprep.subr.mxu0 0.0
      %683 = vmatpush1.msra.mxu0 0.0
      %684 = vmatprep.subr.mxu0 0.0
      %685 = vmatpush1.msra.mxu0 0.0
      %686 = vmatprep.subr.mxu0 %v654
      %687 = vmatpush1.msra.mxu0 %v652
      %688 = vmatprep.subr.mxu0 0.0
      %689 = vmatpush2.msra.mxu0 0.0
      %690 = vmatprep.subr.mxu0 0.0
      %691 = vmatpush2.msra.mxu0 0.0
      %692 = vmatprep.subr.mxu0 0.0
      %693 = vmatpush2.msra.mxu0 0.0
      %694 = vmatprep.subr.mxu0 0.0
      %695 = vmatpush2.msra.mxu0 0.0
      %696 = vmatprep.subr.mxu0 0.0
      %697 = vmatpush2.msra.mxu0 0.0
      %698 = vmatprep.subr.mxu0 0.0
      %699 = vmatpush2.msra.mxu0 0.0
      %700 = vmatprep.subr.mxu0 0.0
      %701 = vmatpush2.msra.mxu0 0.0
      %702 = vmatprep.subr.mxu0 0.0
      %703 = vmatpush2.msra.mxu0 0.0
      %704 = vmatprep.subr.mxu0 0.0
      %705 = vmatpush2.msra.mxu0 0.0
      %706 = vmatprep.subr.mxu0 0.0
      %707 = vmatpush2.msra.mxu0 0.0
      %708 = vmatprep.subr.mxu0 0.0
      %709 = vmatpush2.msra.mxu0 0.0
      %710 = vmatprep.subr.mxu0 0.0
      %711 = vmatpush2.msra.mxu0 0.0
      %712 = vmatprep.subr.mxu0 0.0
      %713 = vmatpush2.msra.mxu0 0.0
      %714 = vmatprep.subr.mxu0 0.0
      %715 = vmatpush2.msra.mxu0 0.0
      %716 = vmatprep.subr.mxu0 0.0
      %717 = vmatpush2.msra.mxu0 0.0
      %718 = vmatprep.subr.mxu0 0.0
      %719 = vmatpush2.msra.mxu0 0.0
      %720 = vmatprep.mubr.f32.mxu0 0.0
      %721 = vmatmul.mubr.f32.gmra.mxu0 %v650
      %v722 = vpop.f32.mrf.mxu0
      %v723 = vadd.f32 0.0, %v722
      %v724 = vpop.f32.mrf.mxu0
      %v725 = vadd.f32 0.0, %v724
      %726 = vdwg.mxu0
      %v727 = vadd.f32 %v645, %v723
      %v728 = vadd.f32 %v646, %v725
      %s729 = scalar_lea.vmem %s1, 40
      %v730 = vld [vmem:[%s729] sm:$0xff]
      %v732 = vsel %vm301, %v730, 0
      %v735 = vsel %vm305, %v561, 0
      %v738 = vsel %vm305, %v562, 0
      %740 = vmatprep.subr.mxu0 0.0
      %741 = vmatpush1.msra.mxu0 0.0
      %742 = vmatprep.subr.mxu0 0.0
      %743 = vmatpush1.msra.mxu0 0.0
      %744 = vmatprep.subr.mxu0 0.0
      %745 = vmatpush1.msra.mxu0 0.0
      %746 = vmatprep.subr.mxu0 0.0
      %747 = vmatpush1.msra.mxu0 0.0
      %748 = vmatprep.subr.mxu0 0.0
      %749 = vmatpush1.msra.mxu0 0.0
      %750 = vmatprep.subr.mxu0 0.0
      %751 = vmatpush1.msra.mxu0 0.0
      %752 = vmatprep.subr.mxu0 0.0
      %753 = vmatpush1.msra.mxu0 0.0
      %754 = vmatprep.subr.mxu0 0.0
      %755 = vmatpush1.msra.mxu0 0.0
      %756 = vmatprep.subr.mxu0 0.0
      %757 = vmatpush1.msra.mxu0 0.0
      %758 = vmatprep.subr.mxu0 0.0
      %759 = vmatpush1.msra.mxu0 0.0
      %760 = vmatprep.subr.mxu0 0.0
      %761 = vmatpush1.msra.mxu0 0.0
      %762 = vmatprep.subr.mxu0 0.0
      %763 = vmatpush1.msra.mxu0 0.0
      %764 = vmatprep.subr.mxu0 0.0
      %765 = vmatpush1.msra.mxu0 0.0
      %766 = vmatprep.subr.mxu0 0.0
      %767 = vmatpush1.msra.mxu0 0.0
      %768 = vmatprep.subr.mxu0 0.0
      %769 = vmatpush1.msra.mxu0 0.0
      %770 = vmatprep.subr.mxu0 %v738
      %771 = vmatpush1.msra.mxu0 %v735
      %772 = vmatprep.subr.mxu0 0.0
      %773 = vmatpush2.msra.mxu0 0.0
      %774 = vmatprep.subr.mxu0 0.0
      %775 = vmatpush2.msra.mxu0 0.0
      %776 = vmatprep.subr.mxu0 0.0
      %777 = vmatpush2.msra.mxu0 0.0
      %778 = vmatprep.subr.mxu0 0.0
      %779 = vmatpush2.msra.mxu0 0.0
      %780 = vmatprep.subr.mxu0 0.0
      %781 = vmatpush2.msra.mxu0 0.0
      %782 = vmatprep.subr.mxu0 0.0
      %783 = vmatpush2.msra.mxu0 0.0
      %784 = vmatprep.subr.mxu0 0.0
      %785 = vmatpush2.msra.mxu0 0.0
      %786 = vmatprep.subr.mxu0 0.0
      %787 = vmatpush2.msra.mxu0 0.0
      %788 = vmatprep.subr.mxu0 0.0
      %789 = vmatpush2.msra.mxu0 0.0
      %790 = vmatprep.subr.mxu0 0.0
      %791 = vmatpush2.msra.mxu0 0.0
      %792 = vmatprep.subr.mxu0 0.0
      %793 = vmatpush2.msra.mxu0 0.0
      %794 = vmatprep.subr.mxu0 0.0
      %795 = vmatpush2.msra.mxu0 0.0
      %796 = vmatprep.subr.mxu0 0.0
      %797 = vmatpush2.msra.mxu0 0.0
      %798 = vmatprep.subr.mxu0 0.0
      %799 = vmatpush2.msra.mxu0 0.0
      %800 = vmatprep.subr.mxu0 0.0
      %801 = vmatpush2.msra.mxu0 0.0
      %802 = vmatprep.subr.mxu0 0.0
      %803 = vmatpush2.msra.mxu0 0.0
      %804 = vmatprep.mubr.f32.mxu0 0.0
      %805 = vmatmul.mubr.f32.gmra.mxu0 %v732
      %v806 = vpop.f32.mrf.mxu0
      %v807 = vadd.f32 0.0, %v806
      %v808 = vpop.f32.mrf.mxu0
      %v809 = vadd.f32 0.0, %v808
      %810 = vdwg.mxu0
      %v811 = vadd.f32 %v727, %v807
      %v812 = vadd.f32 %v728, %v809
      %813 = vrot.lane.b32.xlu0 %v256, 1
      %v814 = vpop.permute.xlu0 %813
      %815 = vrot.lane.b32.xlu0 %v257, 1
      %v816 = vpop.permute.xlu0 %815
      %v817 = vsel %vm262, %v814, %v816
      %v818 = vsel %vm262, %v816, %v814
      %v819 = vmul.f32 %v818, %v269
      %v820 = vmul.f32 %v817, %v273
      %821 = vrot.lane.b32.xlu0 %v256, 127
      %v822 = vpop.permute.xlu0 %821
      %823 = vrot.lane.b32.xlu0 %v257, 127
      %v824 = vpop.permute.xlu0 %823
      %v825 = vsel %vm282, %v822, %v824
      %v826 = vsel %vm282, %v824, %v822
      %v827 = vmul.f32 %v825, %v289
      %v828 = vmul.f32 %v826, %v293
      %s829 = scalar_lea.vmem %s1, 48
      %v830 = vld [vmem:[%s829] sm:$0xff]
      %v832 = vsel %vm301, %v830, 0
      %v835 = vsel %vm305, %v819, 0
      %v838 = vsel %vm305, %v820, 0
      %840 = vmatprep.subr.mxu0 0.0
      %841 = vmatpush1.msra.mxu0 0.0
      %842 = vmatprep.subr.mxu0 0.0
      %843 = vmatpush1.msra.mxu0 0.0
      %844 = vmatprep.subr.mxu0 0.0
      %845 = vmatpush1.msra.mxu0 0.0
      %846 = vmatprep.subr.mxu0 0.0
      %847 = vmatpush1.msra.mxu0 0.0
      %848 = vmatprep.subr.mxu0 0.0
      %849 = vmatpush1.msra.mxu0 0.0
      %850 = vmatprep.subr.mxu0 0.0
      %851 = vmatpush1.msra.mxu0 0.0
      %852 = vmatprep.subr.mxu0 0.0
      %853 = vmatpush1.msra.mxu0 0.0
      %854 = vmatprep.subr.mxu0 0.0
      %855 = vmatpush1.msra.mxu0 0.0
      %856 = vmatprep.subr.mxu0 0.0
      %857 = vmatpush1.msra.mxu0 0.0
      %858 = vmatprep.subr.mxu0 0.0
      %859 = vmatpush1.msra.mxu0 0.0
      %860 = vmatprep.subr.mxu0 0.0
      %861 = vmatpush1.msra.mxu0 0.0
      %862 = vmatprep.subr.mxu0 0.0
      %863 = vmatpush1.msra.mxu0 0.0
      %864 = vmatprep.subr.mxu0 0.0
      %865 = vmatpush1.msra.mxu0 0.0
      %866 = vmatprep.subr.mxu0 0.0
      %867 = vmatpush1.msra.mxu0 0.0
      %868 = vmatprep.subr.mxu0 0.0
      %869 = vmatpush1.msra.mxu0 0.0
      %870 = vmatprep.subr.mxu0 %v838
      %871 = vmatpush1.msra.mxu0 %v835
      %872 = vmatprep.subr.mxu0 0.0
      %873 = vmatpush2.msra.mxu0 0.0
      %874 = vmatprep.subr.mxu0 0.0
      %875 = vmatpush2.msra.mxu0 0.0
      %876 = vmatprep.subr.mxu0 0.0
      %877 = vmatpush2.msra.mxu0 0.0
      %878 = vmatprep.subr.mxu0 0.0
      %879 = vmatpush2.msra.mxu0 0.0
      %880 = vmatprep.subr.mxu0 0.0
      %881 = vmatpush2.msra.mxu0 0.0
      %882 = vmatprep.subr.mxu0 0.0
      %883 = vmatpush2.msra.mxu0 0.0
      %884 = vmatprep.subr.mxu0 0.0
      %885 = vmatpush2.msra.mxu0 0.0
      %886 = vmatprep.subr.mxu0 0.0
      %887 = vmatpush2.msra.mxu0 0.0
      %888 = vmatprep.subr.mxu0 0.0
      %889 = vmatpush2.msra.mxu0 0.0
      %890 = vmatprep.subr.mxu0 0.0
      %891 = vmatpush2.msra.mxu0 0.0
      %892 = vmatprep.subr.mxu0 0.0
      %893 = vmatpush2.msra.mxu0 0.0
      %894 = vmatprep.subr.mxu0 0.0
      %895 = vmatpush2.msra.mxu0 0.0
      %896 = vmatprep.subr.mxu0 0.0
      %897 = vmatpush2.msra.mxu0 0.0
      %898 = vmatprep.subr.mxu0 0.0
      %899 = vmatpush2.msra.mxu0 0.0
      %900 = vmatprep.subr.mxu0 0.0
      %901 = vmatpush2.msra.mxu0 0.0
      %902 = vmatprep.subr.mxu0 0.0
      %903 = vmatpush2.msra.mxu0 0.0
      %904 = vmatprep.mubr.f32.mxu0 0.0
      %905 = vmatmul.mubr.f32.gmra.mxu0 %v832
      %v906 = vpop.f32.mrf.mxu0
      %v907 = vadd.f32 0.0, %v906
      %v908 = vpop.f32.mrf.mxu0
      %v909 = vadd.f32 0.0, %v908
      %910 = vdwg.mxu0
      %v911 = vadd.f32 %v811, %v907
      %v912 = vadd.f32 %v812, %v909
      %s913 = scalar_lea.vmem %s1, 56
      %v914 = vld [vmem:[%s913] sm:$0xff]
      %v916 = vsel %vm301, %v914, 0
      %v919 = vsel %vm305, %v256, 0
      %v922 = vsel %vm305, %v257, 0
      %924 = vmatprep.subr.mxu0 0.0
      %925 = vmatpush1.msra.mxu0 0.0
      %926 = vmatprep.subr.mxu0 0.0
      %927 = vmatpush1.msra.mxu0 0.0
      %928 = vmatprep.subr.mxu0 0.0
      %929 = vmatpush1.msra.mxu0 0.0
      %930 = vmatprep.subr.mxu0 0.0
      %931 = vmatpush1.msra.mxu0 0.0
      %932 = vmatprep.subr.mxu0 0.0
      %933 = vmatpush1.msra.mxu0 0.0
      %934 = vmatprep.subr.mxu0 0.0
      %935 = vmatpush1.msra.mxu0 0.0
      %936 = vmatprep.subr.mxu0 0.0
      %937 = vmatpush1.msra.mxu0 0.0
      %938 = vmatprep.subr.mxu0 0.0
      %939 = vmatpush1.msra.mxu0 0.0
      %940 = vmatprep.subr.mxu0 0.0
      %941 = vmatpush1.msra.mxu0 0.0
      %942 = vmatprep.subr.mxu0 0.0
      %943 = vmatpush1.msra.mxu0 0.0
      %944 = vmatprep.subr.mxu0 0.0
      %945 = vmatpush1.msra.mxu0 0.0
      %946 = vmatprep.subr.mxu0 0.0
      %947 = vmatpush1.msra.mxu0 0.0
      %948 = vmatprep.subr.mxu0 0.0
      %949 = vmatpush1.msra.mxu0 0.0
      %950 = vmatprep.subr.mxu0 0.0
      %951 = vmatpush1.msra.mxu0 0.0
      %952 = vmatprep.subr.mxu0 0.0
      %953 = vmatpush1.msra.mxu0 0.0
      %954 = vmatprep.subr.mxu0 %v922
      %955 = vmatpush1.msra.mxu0 %v919
      %956 = vmatprep.subr.mxu0 0.0
      %957 = vmatpush2.msra.mxu0 0.0
      %958 = vmatprep.subr.mxu0 0.0
      %959 = vmatpush2.msra.mxu0 0.0
      %960 = vmatprep.subr.mxu0 0.0
      %961 = vmatpush2.msra.mxu0 0.0
      %962 = vmatprep.subr.mxu0 0.0
      %963 = vmatpush2.msra.mxu0 0.0
      %964 = vmatprep.subr.mxu0 0.0
      %965 = vmatpush2.msra.mxu0 0.0
      %966 = vmatprep.subr.mxu0 0.0
      %967 = vmatpush2.msra.mxu0 0.0
      %968 = vmatprep.subr.mxu0 0.0
      %969 = vmatpush2.msra.mxu0 0.0
      %970 = vmatprep.subr.mxu0 0.0
      %971 = vmatpush2.msra.mxu0 0.0
      %972 = vmatprep.subr.mxu0 0.0
      %973 = vmatpush2.msra.mxu0 0.0
      %974 = vmatprep.subr.mxu0 0.0
      %975 = vmatpush2.msra.mxu0 0.0
      %976 = vmatprep.subr.mxu0 0.0
      %977 = vmatpush2.msra.mxu0 0.0
      %978 = vmatprep.subr.mxu0 0.0
      %979 = vmatpush2.msra.mxu0 0.0
      %980 = vmatprep.subr.mxu0 0.0
      %981 = vmatpush2.msra.mxu0 0.0
      %982 = vmatprep.subr.mxu0 0.0
      %983 = vmatpush2.msra.mxu0 0.0
      %984 = vmatprep.subr.mxu0 0.0
      %985 = vmatpush2.msra.mxu0 0.0
      %986 = vmatprep.subr.mxu0 0.0
      %987 = vmatpush2.msra.mxu0 0.0
      %988 = vmatprep.mubr.f32.mxu0 0.0
      %989 = vmatmul.mubr.f32.gmra.mxu0 %v916
      %v990 = vpop.f32.mrf.mxu0
      %v991 = vadd.f32 0.0, %v990
      %v992 = vpop.f32.mrf.mxu0
      %v993 = vadd.f32 0.0, %v992
      %994 = vdwg.mxu0
      %v995 = vadd.f32 %v911, %v991
      %v996 = vadd.f32 %v912, %v993
      %s997 = scalar_lea.vmem %s1, 64
      %v998 = vld [vmem:[%s997] sm:$0xff]
      %v1000 = vsel %vm301, %v998, 0
      %v1003 = vsel %vm305, %v827, 0
      %v1006 = vsel %vm305, %v828, 0
      %1008 = vmatprep.subr.mxu0 0.0
      %1009 = vmatpush1.msra.mxu0 0.0
      %1010 = vmatprep.subr.mxu0 0.0
      %1011 = vmatpush1.msra.mxu0 0.0
      %1012 = vmatprep.subr.mxu0 0.0
      %1013 = vmatpush1.msra.mxu0 0.0
      %1014 = vmatprep.subr.mxu0 0.0
      %1015 = vmatpush1.msra.mxu0 0.0
      %1016 = vmatprep.subr.mxu0 0.0
      %1017 = vmatpush1.msra.mxu0 0.0
      %1018 = vmatprep.subr.mxu0 0.0
      %1019 = vmatpush1.msra.mxu0 0.0
      %1020 = vmatprep.subr.mxu0 0.0
      %1021 = vmatpush1.msra.mxu0 0.0
      %1022 = vmatprep.subr.mxu0 0.0
      %1023 = vmatpush1.msra.mxu0 0.0
      %1024 = vmatprep.subr.mxu0 0.0
      %1025 = vmatpush1.msra.mxu0 0.0
      %1026 = vmatprep.subr.mxu0 0.0
      %1027 = vmatpush1.msra.mxu0 0.0
      %1028 = vmatprep.subr.mxu0 0.0
      %1029 = vmatpush1.msra.mxu0 0.0
      %1030 = vmatprep.subr.mxu0 0.0
      %1031 = vmatpush1.msra.mxu0 0.0
      %1032 = vmatprep.subr.mxu0 0.0
      %1033 = vmatpush1.msra.mxu0 0.0
      %1034 = vmatprep.subr.mxu0 0.0
      %1035 = vmatpush1.msra.mxu0 0.0
      %1036 = vmatprep.subr.mxu0 0.0
      %1037 = vmatpush1.msra.mxu0 0.0
      %1038 = vmatprep.subr.mxu0 %v1006
      %1039 = vmatpush1.msra.mxu0 %v1003
      %1040 = vmatprep.subr.mxu0 0.0
      %1041 = vmatpush2.msra.mxu0 0.0
      %1042 = vmatprep.subr.mxu0 0.0
      %1043 = vmatpush2.msra.mxu0 0.0
      %1044 = vmatprep.subr.mxu0 0.0
      %1045 = vmatpush2.msra.mxu0 0.0
      %1046 = vmatprep.subr.mxu0 0.0
      %1047 = vmatpush2.msra.mxu0 0.0
      %1048 = vmatprep.subr.mxu0 0.0
      %1049 = vmatpush2.msra.mxu0 0.0
      %1050 = vmatprep.subr.mxu0 0.0
      %1051 = vmatpush2.msra.mxu0 0.0
      %1052 = vmatprep.subr.mxu0 0.0
      %1053 = vmatpush2.msra.mxu0 0.0
      %1054 = vmatprep.subr.mxu0 0.0
      %1055 = vmatpush2.msra.mxu0 0.0
      %1056 = vmatprep.subr.mxu0 0.0
      %1057 = vmatpush2.msra.mxu0 0.0
      %1058 = vmatprep.subr.mxu0 0.0
      %1059 = vmatpush2.msra.mxu0 0.0
      %1060 = vmatprep.subr.mxu0 0.0
      %1061 = vmatpush2.msra.mxu0 0.0
      %1062 = vmatprep.subr.mxu0 0.0
      %1063 = vmatpush2.msra.mxu0 0.0
      %1064 = vmatprep.subr.mxu0 0.0
      %1065 = vmatpush2.msra.mxu0 0.0
      %1066 = vmatprep.subr.mxu0 0.0
      %1067 = vmatpush2.msra.mxu0 0.0
      %1068 = vmatprep.subr.mxu0 0.0
      %1069 = vmatpush2.msra.mxu0 0.0
      %1070 = vmatprep.subr.mxu0 0.0
      %1071 = vmatpush2.msra.mxu0 0.0
      %1072 = vmatprep.mubr.f32.mxu0 0.0
      %1073 = vmatmul.mubr.f32.gmra.mxu0 %v1000
      %v1074 = vpop.f32.mrf.mxu0
      %v1075 = vadd.f32 0.0, %v1074
      %v1076 = vpop.f32.mrf.mxu0
      %v1077 = vadd.f32 0.0, %v1076
      %1078 = vdwg.mxu0
      %v1079 = vadd.f32 %v995, %v1075
      %v1080 = vadd.f32 %v996, %v1077
      %1081 = vmatprep.subr.mxu0 0.0
      %1082 = vmatpush1.msra.mxu0 1.0
      %1083 = vmatprep.subr.mxu0 0.0
      %1084 = vmatpush1.msra.mxu0 1.0
      %1085 = vmatprep.subr.mxu0 0.0
      %1086 = vmatpush1.msra.mxu0 1.0
      %1087 = vmatprep.subr.mxu0 0.0
      %1088 = vmatpush1.msra.mxu0 1.0
      %1089 = vmatprep.subr.mxu0 0.0
      %1090 = vmatpush1.msra.mxu0 1.0
      %1091 = vmatprep.subr.mxu0 0.0
      %1092 = vmatpush1.msra.mxu0 1.0
      %1093 = vmatprep.subr.mxu0 0.0
      %1094 = vmatpush1.msra.mxu0 1.0
      %1095 = vmatprep.subr.mxu0 0.0
      %1096 = vmatpush1.msra.mxu0 1.0
      %1097 = vmatprep.subr.mxu0 0.0
      %1098 = vmatpush1.msra.mxu0 1.0
      %1099 = vmatprep.subr.mxu0 0.0
      %1100 = vmatpush1.msra.mxu0 1.0
      %1101 = vmatprep.subr.mxu0 0.0
      %1102 = vmatpush1.msra.mxu0 1.0
      %1103 = vmatprep.subr.mxu0 0.0
      %1104 = vmatpush1.msra.mxu0 1.0
      %1105 = vmatprep.subr.mxu0 0.0
      %1106 = vmatpush1.msra.mxu0 1.0
      %1107 = vmatprep.subr.mxu0 0.0
      %1108 = vmatpush1.msra.mxu0 1.0
      %1109 = vmatprep.subr.mxu0 0.0
      %1110 = vmatpush1.msra.mxu0 1.0
      %1111 = vmatprep.subr.mxu0 0.0
      %1112 = vmatpush1.msra.mxu0 1.0
      %1113 = vmatprep.subr.mxu0 0.0
      %1114 = vmatpush2.msra.mxu0 1.0
      %1115 = vmatprep.subr.mxu0 0.0
      %1116 = vmatpush2.msra.mxu0 1.0
      %1117 = vmatprep.subr.mxu0 0.0
      %1118 = vmatpush2.msra.mxu0 1.0
      %1119 = vmatprep.subr.mxu0 0.0
      %1120 = vmatpush2.msra.mxu0 1.0
      %1121 = vmatprep.subr.mxu0 0.0
      %1122 = vmatpush2.msra.mxu0 1.0
      %1123 = vmatprep.subr.mxu0 0.0
      %1124 = vmatpush2.msra.mxu0 1.0
      %1125 = vmatprep.subr.mxu0 0.0
      %1126 = vmatpush2.msra.mxu0 1.0
      %1127 = vmatprep.subr.mxu0 0.0
      %1128 = vmatpush2.msra.mxu0 1.0
      %1129 = vmatprep.subr.mxu0 0.0
      %1130 = vmatpush2.msra.mxu0 1.0
      %1131 = vmatprep.subr.mxu0 0.0
      %1132 = vmatpush2.msra.mxu0 1.0
      %1133 = vmatprep.subr.mxu0 0.0
      %1134 = vmatpush2.msra.mxu0 1.0
      %1135 = vmatprep.subr.mxu0 0.0
      %1136 = vmatpush2.msra.mxu0 1.0
      %1137 = vmatprep.subr.mxu0 0.0
      %1138 = vmatpush2.msra.mxu0 1.0
      %1139 = vmatprep.subr.mxu0 0.0
      %1140 = vmatpush2.msra.mxu0 1.0
      %1141 = vmatprep.subr.mxu0 0.0
      %1142 = vmatpush2.msra.mxu0 1.0
      %1143 = vmatprep.subr.mxu0 0.0
      %1144 = vmatpush2.msra.mxu0 1.0
      %1145 = vmatprep.mubr.f32.mxu0 %v1080
      %1146 = vmatmul.mubr.f32.gmra.mxu0 %v1079
      %v1147 = vpop.f32.mrf.mxu0
      %v1148 = vadd.f32 0.0, %v1147
      %v1149 = vpop.f32.mrf.mxu0
      %1150 = vdwg.mxu0
      %v1151 = vmul.f32 %v1148, 0.00390625
      %1153 = vset.pattern.permute.xlu0 0
      %1154 = vperm.xlu0 %1153, %v1151
      %v1155 = vpop.permute.xlu0 %1154
      %v1157 = vsub.f32 %v1079, %v1155
      %v1158 = vsub.f32 %v1080, %v1155
      %v1159 = vmul.f32 %v1157, %v1157
      %v1160 = vmul.f32 %v1158, %v1158
      %1161 = vmatprep.subr.mxu0 0.0
      %1162 = vmatpush1.msra.mxu0 1.0
      %1163 = vmatprep.subr.mxu0 0.0
      %1164 = vmatpush1.msra.mxu0 1.0
      %1165 = vmatprep.subr.mxu0 0.0
      %1166 = vmatpush1.msra.mxu0 1.0
      %1167 = vmatprep.subr.mxu0 0.0
      %1168 = vmatpush1.msra.mxu0 1.0
      %1169 = vmatprep.subr.mxu0 0.0
      %1170 = vmatpush1.msra.mxu0 1.0
      %1171 = vmatprep.subr.mxu0 0.0
      %1172 = vmatpush1.msra.mxu0 1.0
      %1173 = vmatprep.subr.mxu0 0.0
      %1174 = vmatpush1.msra.mxu0 1.0
      %1175 = vmatprep.subr.mxu0 0.0
      %1176 = vmatpush1.msra.mxu0 1.0
      %1177 = vmatprep.subr.mxu0 0.0
      %1178 = vmatpush1.msra.mxu0 1.0
      %1179 = vmatprep.subr.mxu0 0.0
      %1180 = vmatpush1.msra.mxu0 1.0
      %1181 = vmatprep.subr.mxu0 0.0
      %1182 = vmatpush1.msra.mxu0 1.0
      %1183 = vmatprep.subr.mxu0 0.0
      %1184 = vmatpush1.msra.mxu0 1.0
      %1185 = vmatprep.subr.mxu0 0.0
      %1186 = vmatpush1.msra.mxu0 1.0
      %1187 = vmatprep.subr.mxu0 0.0
      %1188 = vmatpush1.msra.mxu0 1.0
      %1189 = vmatprep.subr.mxu0 0.0
      %1190 = vmatpush1.msra.mxu0 1.0
      %1191 = vmatprep.subr.mxu0 0.0
      %1192 = vmatpush1.msra.mxu0 1.0
      %1193 = vmatprep.subr.mxu0 0.0
      %1194 = vmatpush2.msra.mxu0 1.0
      %1195 = vmatprep.subr.mxu0 0.0
      %1196 = vmatpush2.msra.mxu0 1.0
      %1197 = vmatprep.subr.mxu0 0.0
      %1198 = vmatpush2.msra.mxu0 1.0
      %1199 = vmatprep.subr.mxu0 0.0
      %1200 = vmatpush2.msra.mxu0 1.0
      %1201 = vmatprep.subr.mxu0 0.0
      %1202 = vmatpush2.msra.mxu0 1.0
      %1203 = vmatprep.subr.mxu0 0.0
      %1204 = vmatpush2.msra.mxu0 1.0
      %1205 = vmatprep.subr.mxu0 0.0
      %1206 = vmatpush2.msra.mxu0 1.0
      %1207 = vmatprep.subr.mxu0 0.0
      %1208 = vmatpush2.msra.mxu0 1.0
      %1209 = vmatprep.subr.mxu0 0.0
      %1210 = vmatpush2.msra.mxu0 1.0
      %1211 = vmatprep.subr.mxu0 0.0
      %1212 = vmatpush2.msra.mxu0 1.0
      %1213 = vmatprep.subr.mxu0 0.0
      %1214 = vmatpush2.msra.mxu0 1.0
      %1215 = vmatprep.subr.mxu0 0.0
      %1216 = vmatpush2.msra.mxu0 1.0
      %1217 = vmatprep.subr.mxu0 0.0
      %1218 = vmatpush2.msra.mxu0 1.0
      %1219 = vmatprep.subr.mxu0 0.0
      %1220 = vmatpush2.msra.mxu0 1.0
      %1221 = vmatprep.subr.mxu0 0.0
      %1222 = vmatpush2.msra.mxu0 1.0
      %1223 = vmatprep.subr.mxu0 0.0
      %1224 = vmatpush2.msra.mxu0 1.0
      %1225 = vmatprep.mubr.f32.mxu0 %v1160
      %1226 = vmatmul.mubr.f32.gmra.mxu0 %v1159
      %v1227 = vpop.f32.mrf.mxu0
      %v1228 = vadd.f32 0.0, %v1227
      %v1229 = vpop.f32.mrf.mxu0
      %1230 = vdwg.mxu0
      %1232 = vrot.lane.b32.xlu0 %v1228, 1
      %v1233 = vpop.permute.xlu0 %1232
      %vm1235 = vcmask 7168
      %v1236 = vsel %vm1235, %v1148, %v1233
      %vm1237 = vcmask 15360
      %1238 = vst.msk [vmem:[%s204] sm:$0xff] %vm1237, %v1236
      %p1239 = scmp.lt.s32.totalorder %s18, 1
      %s1240 = scalar_select %p1239, %s18, 1
      %p1241 = scmp.lt.s32.totalorder %s19, 0
      %s1242 = scalar_select %p1241, %s19, 0
      %s1243 = sadd.s32 %s1242, %s1240
      %s1244 = smul.addr %s1243, 8
      %s1245 = scalar_lea.vmem %s3, %s1244
      // Predicated region
      $region33: #{single_conv.2} parent=31 // pred_check
        %p1246 = pneg %p116
      $region34: #{single_conv.2} parent=31 // pred_check_branch
        %1248 = sbr.rel (%p1246) target = $region36
      $region35: #{single_conv.2} parent=31 // pred_region
        _
      $region36: #{single_conv.2} parent=31 // pred_fallthru
        _
    $region32: #{single_conv.2} parent=5 // pred_fallthru
      _
    %p1249 = scmp.le.s32.totalorder 2, %s9
    // Predicated region
    $region37: #{single_conv.2} parent=5 // pred_check
      %p1250 = pneg %p1249
    $region38: #{single_conv.2} parent=5 // pred_check_branch
      %1252 = sbr.rel (%p1250) target = $region40
    $region39: #{single_conv.2} parent=5 // pred_region
      %s1253 = ssub.s32 %s9, 2
      // Predicated region
      $region41: #{single_conv.2} parent=39 // pred_check
        %p1254 = pneg %p122
      $region42: #{single_conv.2} parent=39 // pred_check_branch
        %1256 = sbr.rel (%p1254) target = $region44
      $region43: #{single_conv.2} parent=39 // pred_region
        %p1257 = scmp.lt.s32.totalorder %s20, 1
        %s1258 = scalar_select %p1257, %s20, 1
        %p1259 = scmp.lt.s32.totalorder %s21, 0
        %s1260 = scalar_select %p1259, %s21, 0
        %s1261 = sadd.s32 %s1260, %s1258
        %s1262 = smul.addr %s1261, 8
        %s1263 = scalar_lea.vmem %s3, %s1262
      $region44: #{single_conv.2} parent=39 // pred_fallthru
        _
    $region40: #{single_conv.2} parent=5 // pred_fallthru
      _
  $region6: #{single_conv.2} parent=0 // loop_footer
    %s13 = sadd.s32 1, %s9
  $region7: #{single_conv.2} parent=0 // loop_footer_branch
    %8 = sbr.rel target = $region3
  $region8: #{single_conv.2} parent=0 // loop_exit
    _

// kernel: single_conv.3
$region0: #{single_conv.3}
  #allocation0 [shape = 'u32[]', space=smem, size = 0x4, offset = 0x4, fixed_abs, tag = 'smem constant byte address 0x4 - core index']
  #allocation1 [shape = 'u32[144,128]{1,0:T(1,128)}', space=vmem, size = 0x12000, scoped, tag = 'internal scratch']
  %s0 = inlined_call_operand.vmem [shape: f32[2,4,256], index: 0, kind: input, shape index: {}]
  %s1 = inlined_call_operand.vmem [shape: f32[9,8,4], index: 1, kind: input, shape index: {}]
  %s2 = inlined_call_operand.vmem [shape: f32[8,256], index: 2, kind: input, shape index: {}]
  %s3 = inlined_call_operand.vmem [shape: f32[8,1], index: 3, kind: input, shape index: {}]
  %s4 = inlined_call_operand.vmem [shape: f32[8,1], index: 4, kind: input, shape index: {}]
  %s5 = inlined_call_operand.vmem [shape: f32[2,8,256], index: 5, kind: output, shape index: {}]
  %s6 = sld [smem:[#allocation0]]
  $region53: #{single_conv.3} parent=0
    _
  %s8 = ssub.s32 1, %s6
  %s9 = scalar_select 0, %s8, %s6
  loop: start=0, step=1, limit=4
  $region2: #{single_conv.3} parent=0 // loop_pre_header
    _
  $region3: #{single_conv.3} parent=0 // loop_header
    %s11 = sphi 0, %s15
    %p12 = scmp.ge.s32.totalorder %s11, 4
    %s18 = sphi 0, %s30
    %s19 = sphi 0, %s26
    %s20 = sphi 0, %s18
    %s21 = sphi 0, %s19
    %s22 = sphi 0, %s20
    %s23 = sphi 0, %s21
    %s35 = sphi 0, %s37
    %s38 = sphi 0, %s35
    %s39 = sphi 0, %s38
    %s55 = sphi 0, %s39
    %s59 = sphi 0, %s59
    %s61 = sphi 0, %s59
    %s62 = sphi 0, %s61
    %s76 = sphi 0, %s62
    %s80 = sphi 0, %s80
    %s82 = sphi 0, %s80
    %s83 = sphi 0, %s82
    %s97 = sphi 0, %s83
    %s101 = sphi 0, %s101
    %s103 = sphi 0, %s101
    %s104 = sphi 0, %s103
    %s118 = sphi 0, %s104
    %s122 = sphi 0, %s122
    %s124 = sphi 0, %s122
    %s125 = sphi 0, %s124
    %s139 = sphi 0, %s125
    %s147 = sphi 0, %s149
    %s150 = sphi 0, %s147
    %s151 = sphi 0, %s150
    %s167 = sphi 0, %s151
  $region4: #{single_conv.3} parent=0 // loop_header_branch
    %14 = sbr.rel (%p12) target = $region8
  $region5: #{single_conv.3} parent=0 // loop_body
    %s16 = ssub.s32 %s11, 1
    %s17 = ssub.s32 %s11, 2
    %s24 = sadd.s32 1, %s19
    %p25 = scmp.ge.s32.totalorder %s24, 1
    %s26 = scalar_select %p25, 0, %s24
    %s27 = sadd.s32 1, %s18
    %s28 = scalar_select %p25, %s27, %s18
    %p29 = scmp.ge.s32.totalorder %s28, 2
    %s30 = scalar_select %p29, 0, %s28
    %s31 = ssub.s32 %s18, %s30
    %s32 = ssub.s32 %s19, %s26
    %s33 = sor.u32 %s31, %s32
    %p34 = scmp.eq.s32.totalorder %s33, 0
    %s36 = sadd.s32 %s35, 1
    %s37 = scalar_select %p34, %s35, %s36
    %p40 = pneg %p34
    %p41 = scmp.eq.s32.totalorder %s11, 1
    %p42 = por %p40, %p41
    %p43 = scmp.ne.s32.totalorder %s35, %s38
    %p44 = scmp.eq.s32.totalorder %s11, 0
    %p45 = por %p43, %p44
    %p46 = scmp.ne.s32.totalorder %s35, %s38
    %p47 = scmp.eq.s32.totalorder %s16, 1
    %p48 = por %p46, %p47
    %p49 = scmp.ne.s32.totalorder %s38, %s39
    %p50 = scmp.eq.s32.totalorder %s16, 0
    %p51 = por %p49, %p50
    %p52 = scmp.ne.s32.totalorder %s38, %s39
    %p53 = scmp.eq.s32.totalorder %s17, 1
    %p54 = por %p52, %p53
    %p56 = scmp.ne.s32.totalorder %s39, %s55
    %p57 = scmp.eq.s32.totalorder %s17, 0
    %p58 = por %p56, %p57
    %s60 = sadd.s32 %s59, 1
    %p63 = scmp.eq.s32.totalorder %s11, 1
    %p64 = scmp.ne.s32.totalorder %s59, %s61
    %p65 = scmp.eq.s32.totalorder %s11, 0
    %p66 = por %p64, %p65
    %p67 = scmp.ne.s32.totalorder %s59, %s61
    %p68 = scmp.eq.s32.totalorder %s16, 1
    %p69 = por %p67, %p68
    %p70 = scmp.ne.s32.totalorder %s61, %s62
    %p71 = scmp.eq.s32.totalorder %s16, 0
    %p72 = por %p70, %p71
    %p73 = scmp.ne.s32.totalorder %s61, %s62
    %p74 = scmp.eq.s32.totalorder %s17, 1
    %p75 = por %p73, %p74
    %p77 = scmp.ne.s32.totalorder %s62, %s76
    %p78 = scmp.eq.s32.totalorder %s17, 0
    %p79 = por %p77, %p78
    %s81 = sadd.s32 %s80, 1
    %p84 = scmp.eq.s32.totalorder %s11, 1
    %p85 = scmp.ne.s32.totalorder %s80, %s82
    %p86 = scmp.eq.s32.totalorder %s11, 0
    %p87 = por %p85, %p86
    %p88 = scmp.ne.s32.totalorder %s80, %s82
    %p89 = scmp.eq.s32.totalorder %s16, 1
    %p90 = por %p88, %p89
    %p91 = scmp.ne.s32.totalorder %s82, %s83
    %p92 = scmp.eq.s32.totalorder %s16, 0
    %p93 = por %p91, %p92
    %p94 = scmp.ne.s32.totalorder %s82, %s83
    %p95 = scmp.eq.s32.totalorder %s17, 1
    %p96 = por %p94, %p95
    %p98 = scmp.ne.s32.totalorder %s83, %s97
    %p99 = scmp.eq.s32.totalorder %s17, 0
    %p100 = por %p98, %p99
    %s102 = sadd.s32 %s101, 1
    %p105 = scmp.eq.s32.totalorder %s11, 1
    %p106 = scmp.ne.s32.totalorder %s101, %s103
    %p107 = scmp.eq.s32.totalorder %s11, 0
    %p108 = por %p106, %p107
    %p109 = scmp.ne.s32.totalorder %s101, %s103
    %p110 = scmp.eq.s32.totalorder %s16, 1
    %p111 = por %p109, %p110
    %p112 = scmp.ne.s32.totalorder %s103, %s104
    %p113 = scmp.eq.s32.totalorder %s16, 0
    %p114 = por %p112, %p113
    %p115 = scmp.ne.s32.totalorder %s103, %s104
    %p116 = scmp.eq.s32.totalorder %s17, 1
    %p117 = por %p115, %p116
    %p119 = scmp.ne.s32.totalorder %s104, %s118
    %p120 = scmp.eq.s32.totalorder %s17, 0
    %p121 = por %p119, %p120
    %s123 = sadd.s32 %s122, 1
    %p126 = scmp.eq.s32.totalorder %s11, 1
    %p127 = scmp.ne.s32.totalorder %s122, %s124
    %p128 = scmp.eq.s32.totalorder %s11, 0
    %p129 = por %p127, %p128
    %p130 = scmp.ne.s32.totalorder %s122, %s124
    %p131 = scmp.eq.s32.totalorder %s16, 1
    %p132 = por %p130, %p131
    %p133 = scmp.ne.s32.totalorder %s124, %s125
    %p134 = scmp.eq.s32.totalorder %s16, 0
    %p135 = por %p133, %p134
    %p136 = scmp.ne.s32.totalorder %s124, %s125
    %p137 = scmp.eq.s32.totalorder %s17, 1
    %p138 = por %p136, %p137
    %p140 = scmp.ne.s32.totalorder %s125, %s139
    %p141 = scmp.eq.s32.totalorder %s17, 0
    %p142 = por %p140, %p141
    %s143 = ssub.s32 %s18, %s30
    %s144 = ssub.s32 %s19, %s26
    %s145 = sor.u32 %s143, %s144
    %p146 = scmp.eq.s32.totalorder %s145, 0
    %s148 = sadd.s32 %s147, 1
    %s149 = scalar_select %p146, %s147, %s148
    %p152 = pneg %p146
    %p153 = scmp.eq.s32.totalorder %s11, 1
    %p154 = por %p152, %p153
    %p155 = scmp.ne.s32.totalorder %s147, %s150
    %p156 = scmp.eq.s32.totalorder %s11, 0
    %p157 = por %p155, %p156
    %p158 = scmp.ne.s32.totalorder %s147, %s150
    %p159 = scmp.eq.s32.totalorder %s16, 1
    %p160 = por %p158, %p159
    %p161 = scmp.ne.s32.totalorder %s150, %s151
    %p162 = scmp.eq.s32.totalorder %s16, 0
    %p163 = por %p161, %p162
    %p164 = scmp.ne.s32.totalorder %s150, %s151
    %p165 = scmp.eq.s32.totalorder %s17, 1
    %p166 = por %p164, %p165
    %p168 = scmp.ne.s32.totalorder %s151, %s167
    %p169 = scmp.eq.s32.totalorder %s17, 0
    %p170 = por %p168, %p169
    %p171 = scmp.le.s32.totalorder 1, %s11
    %p172 = scmp.lt.s32.totalorder %s11, 3
    %p173 = pnand %p171, %p172
    %p174 = pneg %p173
    // Predicated region
    $region9: #{single_conv.3} parent=5 // pred_check
      _
    $region10: #{single_conv.3} parent=5 // pred_check_branch
      %176 = sbr.rel (%p173) target = $region12
    $region11: #{single_conv.3} parent=5 // pred_region
      %s177 = ssub.s32 %s11, 1
      // Predicated region
      $region13: #{single_conv.3} parent=11 // pred_check
        %p178 = pneg %p72
      $region14: #{single_conv.3} parent=11 // pred_check_branch
        %180 = sbr.rel (%p178) target = $region16
      $region15: #{single_conv.3} parent=11 // pred_region
        _
      $region16: #{single_conv.3} parent=11 // pred_fallthru
        _
      // Predicated region
      $region17: #{single_conv.3} parent=11 // pred_check
        %p181 = pneg %p93
      $region18: #{single_conv.3} parent=11 // pred_check_branch
        %183 = sbr.rel (%p181) target = $region20
      $region19: #{single_conv.3} parent=11 // pred_region
        _
      $region20: #{single_conv.3} parent=11 // pred_fallthru
        _
      // Predicated region
      $region21: #{single_conv.3} parent=11 // pred_check
        %p184 = pneg %p114
      $region22: #{single_conv.3} parent=11 // pred_check_branch
        %186 = sbr.rel (%p184) target = $region24
      $region23: #{single_conv.3} parent=11 // pred_region
        _
      $region24: #{single_conv.3} parent=11 // pred_fallthru
        _
      // Predicated region
      $region25: #{single_conv.3} parent=11 // pred_check
        %p187 = pneg %p135
      $region26: #{single_conv.3} parent=11 // pred_check_branch
        %189 = sbr.rel (%p187) target = $region28
      $region27: #{single_conv.3} parent=11 // pred_region
        _
      $region28: #{single_conv.3} parent=11 // pred_fallthru
        _
    $region12: #{single_conv.3} parent=5 // pred_fallthru
      _
    %p190 = scmp.lt.s32.totalorder %s11, 2
    // Predicated region
    $region29: #{single_conv.3} parent=5 // pred_check
      %p191 = pneg %p190
    $region30: #{single_conv.3} parent=5 // pred_check_branch
      %193 = sbr.rel (%p191) target = $region32
    $region31: #{single_conv.3} parent=5 // pred_region
      // Predicated region
      $region33: #{single_conv.3} parent=31 // pred_check
        %p194 = pneg %p45
      $region34: #{single_conv.3} parent=31 // pred_check_branch
        %196 = sbr.rel (%p194) target = $region36
      $region35: #{single_conv.3} parent=31 // pred_region
        %s197 = smul.u32 2, %s19
        %p198 = scmp.lt.s32.totalorder %s18, 1
        %s199 = scalar_select %p198, %s18, 1
        %p200 = scmp.lt.s32.totalorder %s197, 1
        %s201 = scalar_select %p200, %s197, 1
        %s202 = smul.addr %s199, 2
        %s203 = sadd.s32 %s201, %s202
        %s204 = smul.addr %s203, 4
        %s205 = scalar_lea.vmem %s0, %s204
        %s206 = smul.u32 2, %s19
      $region36: #{single_conv.3} parent=31 // pred_fallthru
        _
    $region32: #{single_conv.3} parent=5 // pred_fallthru
      _
    %p207 = scmp.le.s32.totalorder 1, %s11
    %p208 = scmp.lt.s32.totalorder %s11, 3
    %p209 = pnand %p207, %p208
    %p210 = pneg %p209
    // Predicated region
    $region37: #{single_conv.3} parent=5 // pred_check
      _
    $region38: #{single_conv.3} parent=5 // pred_check_branch
      %212 = sbr.rel (%p209) target = $region40
    $region39: #{single_conv.3} parent=5 // pred_region
      %s213 = ssub.s32 %s11, 1
      %s214 = smul.u32 2, %s21
      %p215 = scmp.lt.s32.totalorder %s20, 1
      %s216 = scalar_select %p215, %s20, 1
      %p217 = scmp.lt.s32.totalorder %s214, 1
      %s218 = scalar_select %p217, %s214, 1
      %s219 = smul.addr %s216, 2
      %s220 = sadd.s32 %s218, %s219
      %s221 = smul.addr %s220, 4
      %s222 = scalar_lea.vmem %s0, %s221
      %p223 = pneg %p51
      %p224 = pneg %p48
      %p225 = pneg %p72
      %p226 = pneg %p69
      %p227 = pneg %p93
      %p228 = pneg %p90
      %p229 = pneg %p114
      %p230 = pneg %p111
      %p231 = pneg %p135
      %p232 = pneg %p132
      %p233 = pneg %p163
      %p234 = pneg %p160
      %s235 = smul.u32 2, %s21
      %p236 = scmp.lt.s32.totalorder %s20, 1
      %s237 = scalar_select %p236, %s20, 1
      %p238 = scmp.lt.s32.totalorder %s235, 1
      %s239 = scalar_select %p238, %s235, 1
      %s240 = smul.addr %s237, 2
      %s241 = sadd.s32 %s239, %s240
      %s242 = smul.addr %s241, 8
      %s243 = scalar_lea.vmem %s5, %s242
      %s244 = smul.u32 2, %s21
      %p245 = scmp.lt.s32.totalorder %s20, 1
      %s246 = scalar_select %p245, %s20, 1
      %p247 = scmp.lt.s32.totalorder %s244, 1
      %s248 = scalar_select %p247, %s244, 1
      %s249 = smul.addr %s246, 2
      %s250 = sadd.s32 %s248, %s249
      %s251 = smul.addr %s250, 4
      %s252 = scalar_lea.vmem %s0, %s251
      %s253 = smul.u32 2, %s21
      %s254 = smul.u32 2, %s21
      %p255 = scmp.lt.s32.totalorder %s20, 1
      %s256 = scalar_select %p255, %s20, 1
      %p257 = scmp.lt.s32.totalorder %s254, 1
      %s258 = scalar_select %p257, %s254, 1
      %s259 = smul.addr %s256, 2
      %s260 = sadd.s32 %s258, %s259
      %s261 = smul.addr %s260, 8
      %s262 = scalar_lea.vmem %s5, %s261
      %s263 = smul.u32 2, %s21
      %v264 = vld [vmem:[%s252] sm:$0xff]
      %v265 = vld [vmem:[%s2] ss:$8 sm:$0x3]
      %s266 = scalar_lea.vmem %s2, 1
      %v267 = vld [vmem:[%s266] ss:$8 sm:$0x3]
      %s268 = scalar_lea.vmem %s2, 3
      %v269 = vld [vmem:[%s268] ss:$8 sm:$0x3]
      %s270 = scalar_lea.vmem %s2, 5
      %v271 = vld [vmem:[%s270] ss:$8 sm:$0x3]
      %v273 = vcombine.high %v264, %v264
      %275 = vrot.lane.b32.xlu0 %v264, 16
      %v276 = vpop.permute.xlu0 %275
      %277 = vrot.lane.b32.xlu0 %v273, 16
      %v278 = vpop.permute.xlu0 %277
      %v279 = vlaneseq
      %v280 = vand.u32 %v279, 127
      %vm281 = vcmp.lt.s32.totalorder %v280, 16
      %v282 = vsel %vm281, %v276, %v278
      %v283 = vsel %vm281, %v278, %v276
      %v285 = vlaneseq
      %v286 = vshrl.u32 %v285, 7
      %v287 = vsub.s32 0, %v286
      %v288 = vrot.slane %v269, %v287
      %v289 = vlaneseq
      %v290 = vshrl.u32 %v289, 7
      %v291 = vsub.s32 1, %v290
      %v292 = vrot.slane %v269, %v291
      %v295 = vmul.f32 %v283, %v288
      %v296 = vmul.f32 %v282, %v292
      %297 = vrot.lane.b32.xlu0 %v264, 112
      %v298 = vpop.permute.xlu0 %297
      %299 = vrot.lane.b32.xlu0 %v273, 112
      %v300 = vpop.permute.xlu0 %299
      %vm301 = vcmp.lt.s32.totalorder %v280, 112
      %v302 = vsel %vm301, %v298, %v300
      %v303 = vsel %vm301, %v300, %v298
      %v305 = vlaneseq
      %v306 = vshrl.u32 %v305, 7
      %v307 = vsub.s32 0, %v306
      %v308 = vrot.slane %v271, %v307
      %v309 = vlaneseq
      %v310 = vshrl.u32 %v309, 7
      %v311 = vsub.s32 1, %v310
      %v312 = vrot.slane %v271, %v311
      %v315 = vmul.f32 %v302, %v308
      %v316 = vmul.f32 %v303, %v312
      %317 = vrot.lane.b32.xlu0 %v295, 1
      %v318 = vpop.permute.xlu0 %317
      %319 = vrot.lane.b32.xlu0 %v296, 1
      %v320 = vpop.permute.xlu0 %319
      %vm321 = vcmp.lt.s32.totalorder %v280, 1
      %v322 = vsel %vm321, %v318, %v320
      %v323 = vsel %vm321, %v320, %v318
      %v325 = vlaneseq
      %v326 = vshrl.u32 %v325, 7
      %v327 = vsub.s32 0, %v326
      %v328 = vrot.slane %v265, %v327
      %v329 = vlaneseq
      %v330 = vshrl.u32 %v329, 7
      %v331 = vsub.s32 1, %v330
      %v332 = vrot.slane %v265, %v331
      %v335 = vmul.f32 %v323, %v328
      %v336 = vmul.f32 %v322, %v332
      %337 = vrot.lane.b32.xlu0 %v295, 127
      %v338 = vpop.permute.xlu0 %337
      %339 = vrot.lane.b32.xlu0 %v296, 127
      %v340 = vpop.permute.xlu0 %339
      %vm341 = vcmp.lt.s32.totalorder %v280, 127
      %v342 = vsel %vm341, %v338, %v340
      %v343 = vsel %vm341, %v340, %v338
      %v345 = vlaneseq
      %v346 = vshrl.u32 %v345, 7
      %v347 = vsub.s32 0, %v346
      %v348 = vrot.slane %v267, %v347
      %v349 = vlaneseq
      %v350 = vshrl.u32 %v349, 7
      %v351 = vsub.s32 1, %v350
      %v352 = vrot.slane %v267, %v351
      %v355 = vmul.f32 %v342, %v348
      %v356 = vmul.f32 %v343, %v352
      %v357 = vld [vmem:[%s1] sm:$0xff]
      %s358 = scalar_lea.vmem %s1, 8
      %v359 = vld [vmem:[%s358] sm:$0xff]
      %vm360 = vcmask 31744
      %v362 = vsel %vm360, %v359, 0
      %vm364 = vcmask 1043456
      %v366 = vsel %vm364, %v295, 0
      %v369 = vsel %vm364, %v296, 0
      %371 = vmatprep.subr.mxu0 0.0
      %372 = vmatpush1.msra.mxu0 0.0
      %373 = vmatprep.subr.mxu0 0.0
      %374 = vmatpush1.msra.mxu0 0.0
      %375 = vmatprep.subr.mxu0 0.0
      %376 = vmatpush1.msra.mxu0 0.0
      %377 = vmatprep.subr.mxu0 0.0
      %378 = vmatpush1.msra.mxu0 0.0
      %379 = vmatprep.subr.mxu0 0.0
      %380 = vmatpush1.msra.mxu0 0.0
      %381 = vmatprep.subr.mxu0 0.0
      %382 = vmatpush1.msra.mxu0 0.0
      %383 = vmatprep.subr.mxu0 0.0
      %384 = vmatpush1.msra.mxu0 0.0
      %385 = vmatprep.subr.mxu0 0.0
      %386 = vmatpush1.msra.mxu0 0.0
      %387 = vmatprep.subr.mxu0 0.0
      %388 = vmatpush1.msra.mxu0 0.0
      %389 = vmatprep.subr.mxu0 0.0
      %390 = vmatpush1.msra.mxu0 0.0
      %391 = vmatprep.subr.mxu0 0.0
      %392 = vmatpush1.msra.mxu0 0.0
      %393 = vmatprep.subr.mxu0 0.0
      %394 = vmatpush1.msra.mxu0 0.0
      %395 = vmatprep.subr.mxu0 0.0
      %396 = vmatpush1.msra.mxu0 0.0
      %397 = vmatprep.subr.mxu0 0.0
      %398 = vmatpush1.msra.mxu0 0.0
      %399 = vmatprep.subr.mxu0 0.0
      %400 = vmatpush1.msra.mxu0 0.0
      %401 = vmatprep.subr.mxu0 %v369
      %402 = vmatpush1.msra.mxu0 %v366
      %403 = vmatprep.subr.mxu0 0.0
      %404 = vmatpush2.msra.mxu0 0.0
      %405 = vmatprep.subr.mxu0 0.0
      %406 = vmatpush2.msra.mxu0 0.0
      %407 = vmatprep.subr.mxu0 0.0
      %408 = vmatpush2.msra.mxu0 0.0
      %409 = vmatprep.subr.mxu0 0.0
      %410 = vmatpush2.msra.mxu0 0.0
      %411 = vmatprep.subr.mxu0 0.0
      %412 = vmatpush2.msra.mxu0 0.0
      %413 = vmatprep.subr.mxu0 0.0
      %414 = vmatpush2.msra.mxu0 0.0
      %415 = vmatprep.subr.mxu0 0.0
      %416 = vmatpush2.msra.mxu0 0.0
      %417 = vmatprep.subr.mxu0 0.0
      %418 = vmatpush2.msra.mxu0 0.0
      %419 = vmatprep.subr.mxu0 0.0
      %420 = vmatpush2.msra.mxu0 0.0
      %421 = vmatprep.subr.mxu0 0.0
      %422 = vmatpush2.msra.mxu0 0.0
      %423 = vmatprep.subr.mxu0 0.0
      %424 = vmatpush2.msra.mxu0 0.0
      %425 = vmatprep.subr.mxu0 0.0
      %426 = vmatpush2.msra.mxu0 0.0
      %427 = vmatprep.subr.mxu0 0.0
      %428 = vmatpush2.msra.mxu0 0.0
      %429 = vmatprep.subr.mxu0 0.0
      %430 = vmatpush2.msra.mxu0 0.0
      %431 = vmatprep.subr.mxu0 0.0
      %432 = vmatpush2.msra.mxu0 0.0
      %433 = vmatprep.subr.mxu0 0.0
      %434 = vmatpush2.msra.mxu0 0.0
      %435 = vmatprep.mubr.f32.mxu0 0.0
      %436 = vmatmul.mubr.f32.gmra.mxu0 %v362
      %v437 = vpop.f32.mrf.mxu0
      %v438 = vadd.f32 0.0, %v437
      %v439 = vpop.f32.mrf.mxu0
      %v440 = vadd.f32 0.0, %v439
      %441 = vdwg.mxu0
      %v443 = vsel %vm360, %v357, 0
      %v446 = vsel %vm364, %v335, 0
      %v449 = vsel %vm364, %v336, 0
      %451 = vmatprep.subr.mxu0 0.0
      %452 = vmatpush1.msra.mxu0 0.0
      %453 = vmatprep.subr.mxu0 0.0
      %454 = vmatpush1.msra.mxu0 0.0
      %455 = vmatprep.subr.mxu0 0.0
      %456 = vmatpush1.msra.mxu0 0.0
      %457 = vmatprep.subr.mxu0 0.0
      %458 = vmatpush1.msra.mxu0 0.0
      %459 = vmatprep.subr.mxu0 0.0
      %460 = vmatpush1.msra.mxu0 0.0
      %461 = vmatprep.subr.mxu0 0.0
      %462 = vmatpush1.msra.mxu0 0.0
      %463 = vmatprep.subr.mxu0 0.0
      %464 = vmatpush1.msra.mxu0 0.0
      %465 = vmatprep.subr.mxu0 0.0
      %466 = vmatpush1.msra.mxu0 0.0
      %467 = vmatprep.subr.mxu0 0.0
      %468 = vmatpush1.msra.mxu0 0.0
      %469 = vmatprep.subr.mxu0 0.0
      %470 = vmatpush1.msra.mxu0 0.0
      %471 = vmatprep.subr.mxu0 0.0
      %472 = vmatpush1.msra.mxu0 0.0
      %473 = vmatprep.subr.mxu0 0.0
      %474 = vmatpush1.msra.mxu0 0.0
      %475 = vmatprep.subr.mxu0 0.0
      %476 = vmatpush1.msra.mxu0 0.0
      %477 = vmatprep.subr.mxu0 0.0
      %478 = vmatpush1.msra.mxu0 0.0
      %479 = vmatprep.subr.mxu0 0.0
      %480 = vmatpush1.msra.mxu0 0.0
      %481 = vmatprep.subr.mxu0 %v449
      %482 = vmatpush1.msra.mxu0 %v446
      %483 = vmatprep.subr.mxu0 0.0
      %484 = vmatpush2.msra.mxu0 0.0
      %485 = vmatprep.subr.mxu0 0.0
      %486 = vmatpush2.msra.mxu0 0.0
      %487 = vmatprep.subr.mxu0 0.0
      %488 = vmatpush2.msra.mxu0 0.0
      %489 = vmatprep.subr.mxu0 0.0
      %490 = vmatpush2.msra.mxu0 0.0
      %491 = vmatprep.subr.mxu0 0.0
      %492 = vmatpush2.msra.mxu0 0.0
      %493 = vmatprep.subr.mxu0 0.0
      %494 = vmatpush2.msra.mxu0 0.0
      %495 = vmatprep.subr.mxu0 0.0
      %496 = vmatpush2.msra.mxu0 0.0
      %497 = vmatprep.subr.mxu0 0.0
      %498 = vmatpush2.msra.mxu0 0.0
      %499 = vmatprep.subr.mxu0 0.0
      %500 = vmatpush2.msra.mxu0 0.0
      %501 = vmatprep.subr.mxu0 0.0
      %502 = vmatpush2.msra.mxu0 0.0
      %503 = vmatprep.subr.mxu0 0.0
      %504 = vmatpush2.msra.mxu0 0.0
      %505 = vmatprep.subr.mxu0 0.0
      %506 = vmatpush2.msra.mxu0 0.0
      %507 = vmatprep.subr.mxu0 0.0
      %508 = vmatpush2.msra.mxu0 0.0
      %509 = vmatprep.subr.mxu0 0.0
      %510 = vmatpush2.msra.mxu0 0.0
      %511 = vmatprep.subr.mxu0 0.0
      %512 = vmatpush2.msra.mxu0 0.0
      %513 = vmatprep.subr.mxu0 0.0
      %514 = vmatpush2.msra.mxu0 0.0
      %515 = vmatprep.mubr.f32.mxu0 0.0
      %516 = vmatmul.mubr.f32.gmra.mxu0 %v443
      %v517 = vpop.f32.mrf.mxu0
      %v518 = vadd.f32 %v438, %v517
      %v519 = vpop.f32.mrf.mxu0
      %v520 = vadd.f32 %v440, %v519
      %521 = vdwg.mxu0
      %s522 = scalar_lea.vmem %s1, 16
      %v523 = vld [vmem:[%s522] sm:$0xff]
      %v525 = vsel %vm360, %v523, 0
      %v528 = vsel %vm364, %v355, 0
      %v531 = vsel %vm364, %v356, 0
      %533 = vmatprep.subr.mxu0 0.0
      %534 = vmatpush1.msra.mxu0 0.0
      %535 = vmatprep.subr.mxu0 0.0
      %536 = vmatpush1.msra.mxu0 0.0
      %537 = vmatprep.subr.mxu0 0.0
      %538 = vmatpush1.msra.mxu0 0.0
      %539 = vmatprep.subr.mxu0 0.0
      %540 = vmatpush1.msra.mxu0 0.0
      %541 = vmatprep.subr.mxu0 0.0
      %542 = vmatpush1.msra.mxu0 0.0
      %543 = vmatprep.subr.mxu0 0.0
      %544 = vmatpush1.msra.mxu0 0.0
      %545 = vmatprep.subr.mxu0 0.0
      %546 = vmatpush1.msra.mxu0 0.0
      %547 = vmatprep.subr.mxu0 0.0
      %548 = vmatpush1.msra.mxu0 0.0
      %549 = vmatprep.subr.mxu0 0.0
      %550 = vmatpush1.msra.mxu0 0.0
      %551 = vmatprep.subr.mxu0 0.0
      %552 = vmatpush1.msra.mxu0 0.0
      %553 = vmatprep.subr.mxu0 0.0
      %554 = vmatpush1.msra.mxu0 0.0
      %555 = vmatprep.subr.mxu0 0.0
      %556 = vmatpush1.msra.mxu0 0.0
      %557 = vmatprep.subr.mxu0 0.0
      %558 = vmatpush1.msra.mxu0 0.0
      %559 = vmatprep.subr.mxu0 0.0
      %560 = vmatpush1.msra.mxu0 0.0
      %561 = vmatprep.subr.mxu0 0.0
      %562 = vmatpush1.msra.mxu0 0.0
      %563 = vmatprep.subr.mxu0 %v531
      %564 = vmatpush1.msra.mxu0 %v528
      %565 = vmatprep.subr.mxu0 0.0
      %566 = vmatpush2.msra.mxu0 0.0
      %567 = vmatprep.subr.mxu0 0.0
      %568 = vmatpush2.msra.mxu0 0.0
      %569 = vmatprep.subr.mxu0 0.0
      %570 = vmatpush2.msra.mxu0 0.0
      %571 = vmatprep.subr.mxu0 0.0
      %572 = vmatpush2.msra.mxu0 0.0
      %573 = vmatprep.subr.mxu0 0.0
      %574 = vmatpush2.msra.mxu0 0.0
      %575 = vmatprep.subr.mxu0 0.0
      %576 = vmatpush2.msra.mxu0 0.0
      %577 = vmatprep.subr.mxu0 0.0
      %578 = vmatpush2.msra.mxu0 0.0
      %579 = vmatprep.subr.mxu0 0.0
      %580 = vmatpush2.msra.mxu0 0.0
      %581 = vmatprep.subr.mxu0 0.0
      %582 = vmatpush2.msra.mxu0 0.0
      %583 = vmatprep.subr.mxu0 0.0
      %584 = vmatpush2.msra.mxu0 0.0
      %585 = vmatprep.subr.mxu0 0.0
      %586 = vmatpush2.msra.mxu0 0.0
      %587 = vmatprep.subr.mxu0 0.0
      %588 = vmatpush2.msra.mxu0 0.0
      %589 = vmatprep.subr.mxu0 0.0
      %590 = vmatpush2.msra.mxu0 0.0
      %591 = vmatprep.subr.mxu0 0.0
      %592 = vmatpush2.msra.mxu0 0.0
      %593 = vmatprep.subr.mxu0 0.0
      %594 = vmatpush2.msra.mxu0 0.0
      %595 = vmatprep.subr.mxu0 0.0
      %596 = vmatpush2.msra.mxu0 0.0
      %597 = vmatprep.mubr.f32.mxu0 0.0
      %598 = vmatmul.mubr.f32.gmra.mxu0 %v525
      %v599 = vpop.f32.mrf.mxu0
      %v600 = vadd.f32 0.0, %v599
      %v601 = vpop.f32.mrf.mxu0
      %v602 = vadd.f32 0.0, %v601
      %603 = vdwg.mxu0
      %v604 = vadd.f32 %v518, %v600
      %v605 = vadd.f32 %v520, %v602
      %606 = vrot.lane.b32.xlu0 %v264, 1
      %v607 = vpop.permute.xlu0 %606
      %608 = vrot.lane.b32.xlu0 %v273, 1
      %v609 = vpop.permute.xlu0 %608
      %v610 = vsel %vm321, %v607, %v609
      %v611 = vsel %vm321, %v609, %v607
      %v612 = vmul.f32 %v611, %v328
      %v613 = vmul.f32 %v610, %v332
      %614 = vrot.lane.b32.xlu0 %v264, 127
      %v615 = vpop.permute.xlu0 %614
      %616 = vrot.lane.b32.xlu0 %v273, 127
      %v617 = vpop.permute.xlu0 %616
      %v618 = vsel %vm341, %v615, %v617
      %v619 = vsel %vm341, %v617, %v615
      %v620 = vmul.f32 %v618, %v348
      %v621 = vmul.f32 %v619, %v352
      %s622 = scalar_lea.vmem %s1, 24
      %v623 = vld [vmem:[%s622] sm:$0xff]
      %v625 = vsel %vm360, %v623, 0
      %v628 = vsel %vm364, %v612, 0
      %v631 = vsel %vm364, %v613, 0
      %633 = vmatprep.subr.mxu0 0.0
      %634 = vmatpush1.msra.mxu0 0.0
      %635 = vmatprep.subr.mxu0 0.0
      %636 = vmatpush1.msra.mxu0 0.0
      %637 = vmatprep.subr.mxu0 0.0
      %638 = vmatpush1.msra.mxu0 0.0
      %639 = vmatprep.subr.mxu0 0.0
      %640 = vmatpush1.msra.mxu0 0.0
      %641 = vmatprep.subr.mxu0 0.0
      %642 = vmatpush1.msra.mxu0 0.0
      %643 = vmatprep.subr.mxu0 0.0
      %644 = vmatpush1.msra.mxu0 0.0
      %645 = vmatprep.subr.mxu0 0.0
      %646 = vmatpush1.msra.mxu0 0.0
      %647 = vmatprep.subr.mxu0 0.0
      %648 = vmatpush1.msra.mxu0 0.0
      %649 = vmatprep.subr.mxu0 0.0
      %650 = vmatpush1.msra.mxu0 0.0
      %651 = vmatprep.subr.mxu0 0.0
      %652 = vmatpush1.msra.mxu0 0.0
      %653 = vmatprep.subr.mxu0 0.0
      %654 = vmatpush1.msra.mxu0 0.0
      %655 = vmatprep.subr.mxu0 0.0
      %656 = vmatpush1.msra.mxu0 0.0
      %657 = vmatprep.subr.mxu0 0.0
      %658 = vmatpush1.msra.mxu0 0.0
      %659 = vmatprep.subr.mxu0 0.0
      %660 = vmatpush1.msra.mxu0 0.0
      %661 = vmatprep.subr.mxu0 0.0
      %662 = vmatpush1.msra.mxu0 0.0
      %663 = vmatprep.subr.mxu0 %v631
      %664 = vmatpush1.msra.mxu0 %v628
      %665 = vmatprep.subr.mxu0 0.0
      %666 = vmatpush2.msra.mxu0 0.0
      %667 = vmatprep.subr.mxu0 0.0
      %668 = vmatpush2.msra.mxu0 0.0
      %669 = vmatprep.subr.mxu0 0.0
      %670 = vmatpush2.msra.mxu0 0.0
      %671 = vmatprep.subr.mxu0 0.0
      %672 = vmatpush2.msra.mxu0 0.0
      %673 = vmatprep.subr.mxu0 0.0
      %674 = vmatpush2.msra.mxu0 0.0
      %675 = vmatprep.subr.mxu0 0.0
      %676 = vmatpush2.msra.mxu0 0.0
      %677 = vmatprep.subr.mxu0 0.0
      %678 = vmatpush2.msra.mxu0 0.0
      %679 = vmatprep.subr.mxu0 0.0
      %680 = vmatpush2.msra.mxu0 0.0
      %681 = vmatprep.subr.mxu0 0.0
      %682 = vmatpush2.msra.mxu0 0.0
      %683 = vmatprep.subr.mxu0 0.0
      %684 = vmatpush2.msra.mxu0 0.0
      %685 = vmatprep.subr.mxu0 0.0
      %686 = vmatpush2.msra.mxu0 0.0
      %687 = vmatprep.subr.mxu0 0.0
      %688 = vmatpush2.msra.mxu0 0.0
      %689 = vmatprep.subr.mxu0 0.0
      %690 = vmatpush2.msra.mxu0 0.0
      %691 = vmatprep.subr.mxu0 0.0
      %692 = vmatpush2.msra.mxu0 0.0
      %693 = vmatprep.subr.mxu0 0.0
      %694 = vmatpush2.msra.mxu0 0.0
      %695 = vmatprep.subr.mxu0 0.0
      %696 = vmatpush2.msra.mxu0 0.0
      %697 = vmatprep.mubr.f32.mxu0 0.0
      %698 = vmatmul.mubr.f32.gmra.mxu0 %v625
      %v699 = vpop.f32.mrf.mxu0
      %v700 = vadd.f32 0.0, %v699
      %v701 = vpop.f32.mrf.mxu0
      %v702 = vadd.f32 0.0, %v701
      %703 = vdwg.mxu0
      %v704 = vadd.f32 %v604, %v700
      %v705 = vadd.f32 %v605, %v702
      %s706 = scalar_lea.vmem %s1, 32
      %v707 = vld [vmem:[%s706] sm:$0xff]
      %v709 = vsel %vm360, %v707, 0
      %v711 = vsel %vm364, %v264, 0
      %v713 = vsel %vm364, %v273, 0
      %715 = vmatprep.subr.mxu0 0.0
      %716 = vmatpush1.msra.mxu0 0.0
      %717 = vmatprep.subr.mxu0 0.0
      %718 = vmatpush1.msra.mxu0 0.0
      %719 = vmatprep.subr.mxu0 0.0
      %720 = vmatpush1.msra.mxu0 0.0
      %721 = vmatprep.subr.mxu0 0.0
      %722 = vmatpush1.msra.mxu0 0.0
      %723 = vmatprep.subr.mxu0 0.0
      %724 = vmatpush1.msra.mxu0 0.0
      %725 = vmatprep.subr.mxu0 0.0
      %726 = vmatpush1.msra.mxu0 0.0
      %727 = vmatprep.subr.mxu0 0.0
      %728 = vmatpush1.msra.mxu0 0.0
      %729 = vmatprep.subr.mxu0 0.0
      %730 = vmatpush1.msra.mxu0 0.0
      %731 = vmatprep.subr.mxu0 0.0
      %732 = vmatpush1.msra.mxu0 0.0
      %733 = vmatprep.subr.mxu0 0.0
      %734 = vmatpush1.msra.mxu0 0.0
      %735 = vmatprep.subr.mxu0 0.0
      %736 = vmatpush1.msra.mxu0 0.0
      %737 = vmatprep.subr.mxu0 0.0
      %738 = vmatpush1.msra.mxu0 0.0
      %739 = vmatprep.subr.mxu0 0.0
      %740 = vmatpush1.msra.mxu0 0.0
      %741 = vmatprep.subr.mxu0 0.0
      %742 = vmatpush1.msra.mxu0 0.0
      %743 = vmatprep.subr.mxu0 0.0
      %744 = vmatpush1.msra.mxu0 0.0
      %745 = vmatprep.subr.mxu0 %v713
      %746 = vmatpush1.msra.mxu0 %v711
      %747 = vmatprep.subr.mxu0 0.0
      %748 = vmatpush2.msra.mxu0 0.0
      %749 = vmatprep.subr.mxu0 0.0
      %750 = vmatpush2.msra.mxu0 0.0
      %751 = vmatprep.subr.mxu0 0.0
      %752 = vmatpush2.msra.mxu0 0.0
      %753 = vmatprep.subr.mxu0 0.0
      %754 = vmatpush2.msra.mxu0 0.0
      %755 = vmatprep.subr.mxu0 0.0
      %756 = vmatpush2.msra.mxu0 0.0
      %757 = vmatprep.subr.mxu0 0.0
      %758 = vmatpush2.msra.mxu0 0.0
      %759 = vmatprep.subr.mxu0 0.0
      %760 = vmatpush2.msra.mxu0 0.0
      %761 = vmatprep.subr.mxu0 0.0
      %762 = vmatpush2.msra.mxu0 0.0
      %763 = vmatprep.subr.mxu0 0.0
      %764 = vmatpush2.msra.mxu0 0.0
      %765 = vmatprep.subr.mxu0 0.0
      %766 = vmatpush2.msra.mxu0 0.0
      %767 = vmatprep.subr.mxu0 0.0
      %768 = vmatpush2.msra.mxu0 0.0
      %769 = vmatprep.subr.mxu0 0.0
      %770 = vmatpush2.msra.mxu0 0.0
      %771 = vmatprep.subr.mxu0 0.0
      %772 = vmatpush2.msra.mxu0 0.0
      %773 = vmatprep.subr.mxu0 0.0
      %774 = vmatpush2.msra.mxu0 0.0
      %775 = vmatprep.subr.mxu0 0.0
      %776 = vmatpush2.msra.mxu0 0.0
      %777 = vmatprep.subr.mxu0 0.0
      %778 = vmatpush2.msra.mxu0 0.0
      %779 = vmatprep.mubr.f32.mxu0 0.0
      %780 = vmatmul.mubr.f32.gmra.mxu0 %v709
      %v781 = vpop.f32.mrf.mxu0
      %v782 = vadd.f32 0.0, %v781
      %v783 = vpop.f32.mrf.mxu0
      %v784 = vadd.f32 0.0, %v783
      %785 = vdwg.mxu0
      %v786 = vadd.f32 %v704, %v782
      %v787 = vadd.f32 %v705, %v784
      %s788 = scalar_lea.vmem %s1, 40
      %v789 = vld [vmem:[%s788] sm:$0xff]
      %v791 = vsel %vm360, %v789, 0
      %v794 = vsel %vm364, %v620, 0
      %v797 = vsel %vm364, %v621, 0
      %799 = vmatprep.subr.mxu0 0.0
      %800 = vmatpush1.msra.mxu0 0.0
      %801 = vmatprep.subr.mxu0 0.0
      %802 = vmatpush1.msra.mxu0 0.0
      %803 = vmatprep.subr.mxu0 0.0
      %804 = vmatpush1.msra.mxu0 0.0
      %805 = vmatprep.subr.mxu0 0.0
      %806 = vmatpush1.msra.mxu0 0.0
      %807 = vmatprep.subr.mxu0 0.0
      %808 = vmatpush1.msra.mxu0 0.0
      %809 = vmatprep.subr.mxu0 0.0
      %810 = vmatpush1.msra.mxu0 0.0
      %811 = vmatprep.subr.mxu0 0.0
      %812 = vmatpush1.msra.mxu0 0.0
      %813 = vmatprep.subr.mxu0 0.0
      %814 = vmatpush1.msra.mxu0 0.0
      %815 = vmatprep.subr.mxu0 0.0
      %816 = vmatpush1.msra.mxu0 0.0
      %817 = vmatprep.subr.mxu0 0.0
      %818 = vmatpush1.msra.mxu0 0.0
      %819 = vmatprep.subr.mxu0 0.0
      %820 = vmatpush1.msra.mxu0 0.0
      %821 = vmatprep.subr.mxu0 0.0
      %822 = vmatpush1.msra.mxu0 0.0
      %823 = vmatprep.subr.mxu0 0.0
      %824 = vmatpush1.msra.mxu0 0.0
      %825 = vmatprep.subr.mxu0 0.0
      %826 = vmatpush1.msra.mxu0 0.0
      %827 = vmatprep.subr.mxu0 0.0
      %828 = vmatpush1.msra.mxu0 0.0
      %829 = vmatprep.subr.mxu0 %v797
      %830 = vmatpush1.msra.mxu0 %v794
      %831 = vmatprep.subr.mxu0 0.0
      %832 = vmatpush2.msra.mxu0 0.0
      %833 = vmatprep.subr.mxu0 0.0
      %834 = vmatpush2.msra.mxu0 0.0
      %835 = vmatprep.subr.mxu0 0.0
      %836 = vmatpush2.msra.mxu0 0.0
      %837 = vmatprep.subr.mxu0 0.0
      %838 = vmatpush2.msra.mxu0 0.0
      %839 = vmatprep.subr.mxu0 0.0
      %840 = vmatpush2.msra.mxu0 0.0
      %841 = vmatprep.subr.mxu0 0.0
      %842 = vmatpush2.msra.mxu0 0.0
      %843 = vmatprep.subr.mxu0 0.0
      %844 = vmatpush2.msra.mxu0 0.0
      %845 = vmatprep.subr.mxu0 0.0
      %846 = vmatpush2.msra.mxu0 0.0
      %847 = vmatprep.subr.mxu0 0.0
      %848 = vmatpush2.msra.mxu0 0.0
      %849 = vmatprep.subr.mxu0 0.0
      %850 = vmatpush2.msra.mxu0 0.0
      %851 = vmatprep.subr.mxu0 0.0
      %852 = vmatpush2.msra.mxu0 0.0
      %853 = vmatprep.subr.mxu0 0.0
      %854 = vmatpush2.msra.mxu0 0.0
      %855 = vmatprep.subr.mxu0 0.0
      %856 = vmatpush2.msra.mxu0 0.0
      %857 = vmatprep.subr.mxu0 0.0
      %858 = vmatpush2.msra.mxu0 0.0
      %859 = vmatprep.subr.mxu0 0.0
      %860 = vmatpush2.msra.mxu0 0.0
      %861 = vmatprep.subr.mxu0 0.0
      %862 = vmatpush2.msra.mxu0 0.0
      %863 = vmatprep.mubr.f32.mxu0 0.0
      %864 = vmatmul.mubr.f32.gmra.mxu0 %v791
      %v865 = vpop.f32.mrf.mxu0
      %v866 = vadd.f32 0.0, %v865
      %v867 = vpop.f32.mrf.mxu0
      %v868 = vadd.f32 0.0, %v867
      %869 = vdwg.mxu0
      %v870 = vadd.f32 %v786, %v866
      %v871 = vadd.f32 %v787, %v868
      %872 = vrot.lane.b32.xlu0 %v315, 1
      %v873 = vpop.permute.xlu0 %872
      %874 = vrot.lane.b32.xlu0 %v316, 1
      %v875 = vpop.permute.xlu0 %874
      %v876 = vsel %vm321, %v873, %v875
      %v877 = vsel %vm321, %v875, %v873
      %v878 = vmul.f32 %v877, %v328
      %v879 = vmul.f32 %v876, %v332
      %880 = vrot.lane.b32.xlu0 %v315, 127
      %v881 = vpop.permute.xlu0 %880
      %882 = vrot.lane.b32.xlu0 %v316, 127
      %v883 = vpop.permute.xlu0 %882
      %v884 = vsel %vm341, %v881, %v883
      %v885 = vsel %vm341, %v883, %v881
      %v886 = vmul.f32 %v884, %v348
      %v887 = vmul.f32 %v885, %v352
      %s888 = scalar_lea.vmem %s1, 48
      %v889 = vld [vmem:[%s888] sm:$0xff]
      %v891 = vsel %vm360, %v889, 0
      %v894 = vsel %vm364, %v878, 0
      %v897 = vsel %vm364, %v879, 0
      %899 = vmatprep.subr.mxu0 0.0
      %900 = vmatpush1.msra.mxu0 0.0
      %901 = vmatprep.subr.mxu0 0.0
      %902 = vmatpush1.msra.mxu0 0.0
      %903 = vmatprep.subr.mxu0 0.0
      %904 = vmatpush1.msra.mxu0 0.0
      %905 = vmatprep.subr.mxu0 0.0
      %906 = vmatpush1.msra.mxu0 0.0
      %907 = vmatprep.subr.mxu0 0.0
      %908 = vmatpush1.msra.mxu0 0.0
      %909 = vmatprep.subr.mxu0 0.0
      %910 = vmatpush1.msra.mxu0 0.0
      %911 = vmatprep.subr.mxu0 0.0
      %912 = vmatpush1.msra.mxu0 0.0
      %913 = vmatprep.subr.mxu0 0.0
      %914 = vmatpush1.msra.mxu0 0.0
      %915 = vmatprep.subr.mxu0 0.0
      %916 = vmatpush1.msra.mxu0 0.0
      %917 = vmatprep.subr.mxu0 0.0
      %918 = vmatpush1.msra.mxu0 0.0
      %919 = vmatprep.subr.mxu0 0.0
      %920 = vmatpush1.msra.mxu0 0.0
      %921 = vmatprep.subr.mxu0 0.0
      %922 = vmatpush1.msra.mxu0 0.0
      %923 = vmatprep.subr.mxu0 0.0
      %924 = vmatpush1.msra.mxu0 0.0
      %925 = vmatprep.subr.mxu0 0.0
      %926 = vmatpush1.msra.mxu0 0.0
      %927 = vmatprep.subr.mxu0 0.0
      %928 = vmatpush1.msra.mxu0 0.0
      %929 = vmatprep.subr.mxu0 %v897
      %930 = vmatpush1.msra.mxu0 %v894
      %931 = vmatprep.subr.mxu0 0.0
      %932 = vmatpush2.msra.mxu0 0.0
      %933 = vmatprep.subr.mxu0 0.0
      %934 = vmatpush2.msra.mxu0 0.0
      %935 = vmatprep.subr.mxu0 0.0
      %936 = vmatpush2.msra.mxu0 0.0
      %937 = vmatprep.subr.mxu0 0.0
      %938 = vmatpush2.msra.mxu0 0.0
      %939 = vmatprep.subr.mxu0 0.0
      %940 = vmatpush2.msra.mxu0 0.0
      %941 = vmatprep.subr.mxu0 0.0
      %942 = vmatpush2.msra.mxu0 0.0
      %943 = vmatprep.subr.mxu0 0.0
      %944 = vmatpush2.msra.mxu0 0.0
      %945 = vmatprep.subr.mxu0 0.0
      %946 = vmatpush2.msra.mxu0 0.0
      %947 = vmatprep.subr.mxu0 0.0
      %948 = vmatpush2.msra.mxu0 0.0
      %949 = vmatprep.subr.mxu0 0.0
      %950 = vmatpush2.msra.mxu0 0.0
      %951 = vmatprep.subr.mxu0 0.0
      %952 = vmatpush2.msra.mxu0 0.0
      %953 = vmatprep.subr.mxu0 0.0
      %954 = vmatpush2.msra.mxu0 0.0
      %955 = vmatprep.subr.mxu0 0.0
      %956 = vmatpush2.msra.mxu0 0.0
      %957 = vmatprep.subr.mxu0 0.0
      %958 = vmatpush2.msra.mxu0 0.0
      %959 = vmatprep.subr.mxu0 0.0
      %960 = vmatpush2.msra.mxu0 0.0
      %961 = vmatprep.subr.mxu0 0.0
      %962 = vmatpush2.msra.mxu0 0.0
      %963 = vmatprep.mubr.f32.mxu0 0.0
      %964 = vmatmul.mubr.f32.gmra.mxu0 %v891
      %v965 = vpop.f32.mrf.mxu0
      %v966 = vadd.f32 0.0, %v965
      %v967 = vpop.f32.mrf.mxu0
      %v968 = vadd.f32 0.0, %v967
      %969 = vdwg.mxu0
      %v970 = vadd.f32 %v870, %v966
      %v971 = vadd.f32 %v871, %v968
      %s972 = scalar_lea.vmem %s1, 56
      %v973 = vld [vmem:[%s972] sm:$0xff]
      %v975 = vsel %vm360, %v973, 0
      %v978 = vsel %vm364, %v315, 0
      %v981 = vsel %vm364, %v316, 0
      %983 = vmatprep.subr.mxu0 0.0
      %984 = vmatpush1.msra.mxu0 0.0
      %985 = vmatprep.subr.mxu0 0.0
      %986 = vmatpush1.msra.mxu0 0.0
      %987 = vmatprep.subr.mxu0 0.0
      %988 = vmatpush1.msra.mxu0 0.0
      %989 = vmatprep.subr.mxu0 0.0
      %990 = vmatpush1.msra.mxu0 0.0
      %991 = vmatprep.subr.mxu0 0.0
      %992 = vmatpush1.msra.mxu0 0.0
      %993 = vmatprep.subr.mxu0 0.0
      %994 = vmatpush1.msra.mxu0 0.0
      %995 = vmatprep.subr.mxu0 0.0
      %996 = vmatpush1.msra.mxu0 0.0
      %997 = vmatprep.subr.mxu0 0.0
      %998 = vmatpush1.msra.mxu0 0.0
      %999 = vmatprep.subr.mxu0 0.0
      %1000 = vmatpush1.msra.mxu0 0.0
      %1001 = vmatprep.subr.mxu0 0.0
      %1002 = vmatpush1.msra.mxu0 0.0
      %1003 = vmatprep.subr.mxu0 0.0
      %1004 = vmatpush1.msra.mxu0 0.0
      %1005 = vmatprep.subr.mxu0 0.0
      %1006 = vmatpush1.msra.mxu0 0.0
      %1007 = vmatprep.subr.mxu0 0.0
      %1008 = vmatpush1.msra.mxu0 0.0
      %1009 = vmatprep.subr.mxu0 0.0
      %1010 = vmatpush1.msra.mxu0 0.0
      %1011 = vmatprep.subr.mxu0 0.0
      %1012 = vmatpush1.msra.mxu0 0.0
      %1013 = vmatprep.subr.mxu0 %v981
      %1014 = vmatpush1.msra.mxu0 %v978
      %1015 = vmatprep.subr.mxu0 0.0
      %1016 = vmatpush2.msra.mxu0 0.0
      %1017 = vmatprep.subr.mxu0 0.0
      %1018 = vmatpush2.msra.mxu0 0.0
      %1019 = vmatprep.subr.mxu0 0.0
      %1020 = vmatpush2.msra.mxu0 0.0
      %1021 = vmatprep.subr.mxu0 0.0
      %1022 = vmatpush2.msra.mxu0 0.0
      %1023 = vmatprep.subr.mxu0 0.0
      %1024 = vmatpush2.msra.mxu0 0.0
      %1025 = vmatprep.subr.mxu0 0.0
      %1026 = vmatpush2.msra.mxu0 0.0
      %1027 = vmatprep.subr.mxu0 0.0
      %1028 = vmatpush2.msra.mxu0 0.0
      %1029 = vmatprep.subr.mxu0 0.0
      %1030 = vmatpush2.msra.mxu0 0.0
      %1031 = vmatprep.subr.mxu0 0.0
      %1032 = vmatpush2.msra.mxu0 0.0
      %1033 = vmatprep.subr.mxu0 0.0
      %1034 = vmatpush2.msra.mxu0 0.0
      %1035 = vmatprep.subr.mxu0 0.0
      %1036 = vmatpush2.msra.mxu0 0.0
      %1037 = vmatprep.subr.mxu0 0.0
      %1038 = vmatpush2.msra.mxu0 0.0
      %1039 = vmatprep.subr.mxu0 0.0
      %1040 = vmatpush2.msra.mxu0 0.0
      %1041 = vmatprep.subr.mxu0 0.0
      %1042 = vmatpush2.msra.mxu0 0.0
      %1043 = vmatprep.subr.mxu0 0.0
      %1044 = vmatpush2.msra.mxu0 0.0
      %1045 = vmatprep.subr.mxu0 0.0
      %1046 = vmatpush2.msra.mxu0 0.0
      %1047 = vmatprep.mubr.f32.mxu0 0.0
      %1048 = vmatmul.mubr.f32.gmra.mxu0 %v975
      %v1049 = vpop.f32.mrf.mxu0
      %v1050 = vadd.f32 0.0, %v1049
      %v1051 = vpop.f32.mrf.mxu0
      %v1052 = vadd.f32 0.0, %v1051
      %1053 = vdwg.mxu0
      %v1054 = vadd.f32 %v970, %v1050
      %v1055 = vadd.f32 %v971, %v1052
      %s1056 = scalar_lea.vmem %s1, 64
      %v1057 = vld [vmem:[%s1056] sm:$0xff]
      %v1059 = vsel %vm360, %v1057, 0
      %v1062 = vsel %vm364, %v886, 0
      %v1065 = vsel %vm364, %v887, 0
      %1067 = vmatprep.subr.mxu0 0.0
      %1068 = vmatpush1.msra.mxu0 0.0
      %1069 = vmatprep.subr.mxu0 0.0
      %1070 = vmatpush1.msra.mxu0 0.0
      %1071 = vmatprep.subr.mxu0 0.0
      %1072 = vmatpush1.msra.mxu0 0.0
      %1073 = vmatprep.subr.mxu0 0.0
      %1074 = vmatpush1.msra.mxu0 0.0
      %1075 = vmatprep.subr.mxu0 0.0
      %1076 = vmatpush1.msra.mxu0 0.0
      %1077 = vmatprep.subr.mxu0 0.0
      %1078 = vmatpush1.msra.mxu0 0.0
      %1079 = vmatprep.subr.mxu0 0.0
      %1080 = vmatpush1.msra.mxu0 0.0
      %1081 = vmatprep.subr.mxu0 0.0
      %1082 = vmatpush1.msra.mxu0 0.0
      %1083 = vmatprep.subr.mxu0 0.0
      %1084 = vmatpush1.msra.mxu0 0.0
      %1085 = vmatprep.subr.mxu0 0.0
      %1086 = vmatpush1.msra.mxu0 0.0
      %1087 = vmatprep.subr.mxu0 0.0
      %1088 = vmatpush1.msra.mxu0 0.0
      %1089 = vmatprep.subr.mxu0 0.0
      %1090 = vmatpush1.msra.mxu0 0.0
      %1091 = vmatprep.subr.mxu0 0.0
      %1092 = vmatpush1.msra.mxu0 0.0
      %1093 = vmatprep.subr.mxu0 0.0
      %1094 = vmatpush1.msra.mxu0 0.0
      %1095 = vmatprep.subr.mxu0 0.0
      %1096 = vmatpush1.msra.mxu0 0.0
      %1097 = vmatprep.subr.mxu0 %v1065
      %1098 = vmatpush1.msra.mxu0 %v1062
      %1099 = vmatprep.subr.mxu0 0.0
      %1100 = vmatpush2.msra.mxu0 0.0
      %1101 = vmatprep.subr.mxu0 0.0
      %1102 = vmatpush2.msra.mxu0 0.0
      %1103 = vmatprep.subr.mxu0 0.0
      %1104 = vmatpush2.msra.mxu0 0.0
      %1105 = vmatprep.subr.mxu0 0.0
      %1106 = vmatpush2.msra.mxu0 0.0
      %1107 = vmatprep.subr.mxu0 0.0
      %1108 = vmatpush2.msra.mxu0 0.0
      %1109 = vmatprep.subr.mxu0 0.0
      %1110 = vmatpush2.msra.mxu0 0.0
      %1111 = vmatprep.subr.mxu0 0.0
      %1112 = vmatpush2.msra.mxu0 0.0
      %1113 = vmatprep.subr.mxu0 0.0
      %1114 = vmatpush2.msra.mxu0 0.0
      %1115 = vmatprep.subr.mxu0 0.0
      %1116 = vmatpush2.msra.mxu0 0.0
      %1117 = vmatprep.subr.mxu0 0.0
      %1118 = vmatpush2.msra.mxu0 0.0
      %1119 = vmatprep.subr.mxu0 0.0
      %1120 = vmatpush2.msra.mxu0 0.0
      %1121 = vmatprep.subr.mxu0 0.0
      %1122 = vmatpush2.msra.mxu0 0.0
      %1123 = vmatprep.subr.mxu0 0.0
      %1124 = vmatpush2.msra.mxu0 0.0
      %1125 = vmatprep.subr.mxu0 0.0
      %1126 = vmatpush2.msra.mxu0 0.0
      %1127 = vmatprep.subr.mxu0 0.0
      %1128 = vmatpush2.msra.mxu0 0.0
      %1129 = vmatprep.subr.mxu0 0.0
      %1130 = vmatpush2.msra.mxu0 0.0
      %1131 = vmatprep.mubr.f32.mxu0 0.0
      %1132 = vmatmul.mubr.f32.gmra.mxu0 %v1059
      %v1133 = vpop.f32.mrf.mxu0
      %v1134 = vadd.f32 0.0, %v1133
      %v1135 = vpop.f32.mrf.mxu0
      %v1136 = vadd.f32 0.0, %v1135
      %1137 = vdwg.mxu0
      %v1138 = vadd.f32 %v1054, %v1134
      %v1139 = vadd.f32 %v1055, %v1136
      %v1140 = vld [vmem:[%s3] sm:$0xff]
      %1142 = vset.pattern.permute.xlu0 0
      %1143 = vperm.xlu0 %1142, %v1140
      %v1144 = vpop.permute.xlu0 %1143
      %v1146 = vmul.f32 %v1138, %v1144
      %v1147 = vmul.f32 %v1139, %v1144
      %v1148 = vld [vmem:[%s4] sm:$0xff]
      %1150 = vset.pattern.permute.xlu0 0
      %1151 = vperm.xlu0 %1150, %v1148
      %v1152 = vpop.permute.xlu0 %1151
      %v1154 = vadd.f32 %v1146, %v1152
      %v1155 = vadd.f32 %v1147, %v1152
      %v1156 = vmax.f32 %v1154, 0.0
      %v1157 = vmax.f32 %v1155, 0.0
      %1158 = vst [vmem:[%s262] sm:$0xff] %v1156
      %1159 = vst [vmem:[%s262 + $0x8] sm:$0xff] %v1157
      %s1160 = smul.u32 2, %s21
      %p1161 = scmp.lt.s32.totalorder %s20, 1
      %s1162 = scalar_select %p1161, %s20, 1
      %p1163 = scmp.lt.s32.totalorder %s1160, 1
      %s1164 = scalar_select %p1163, %s1160, 1
      %s1165 = smul.addr %s1162, 2
      %s1166 = sadd.s32 %s1164, %s1165
      %s1167 = smul.addr %s1166, 8
      %s1168 = scalar_lea.vmem %s5, %s1167
      // Predicated region
      $region41: #{single_conv.3} parent=39 // pred_check
        %p1169 = pneg %p160
      $region42: #{single_conv.3} parent=39 // pred_check_branch
        %1171 = sbr.rel (%p1169) target = $region44
      $region43: #{single_conv.3} parent=39 // pred_region
        %s1172 = smul.u32 2, %s21
      $region44: #{single_conv.3} parent=39 // pred_fallthru
        _
    $region40: #{single_conv.3} parent=5 // pred_fallthru
      _
    %p1173 = scmp.le.s32.totalorder 2, %s11
    // Predicated region
    $region45: #{single_conv.3} parent=5 // pred_check
      %p1174 = pneg %p1173
    $region46: #{single_conv.3} parent=5 // pred_check_branch
      %1176 = sbr.rel (%p1174) target = $region48
    $region47: #{single_conv.3} parent=5 // pred_region
      %s1177 = ssub.s32 %s11, 2
      // Predicated region
      $region49: #{single_conv.3} parent=47 // pred_check
        %p1178 = pneg %p166
      $region50: #{single_conv.3} parent=47 // pred_check_branch
        %1180 = sbr.rel (%p1178) target = $region52
      $region51: #{single_conv.3} parent=47 // pred_region
        %s1181 = smul.u32 2, %s23
        %p1182 = scmp.lt.s32.totalorder %s22, 1
        %s1183 = scalar_select %p1182, %s22, 1
        %p1184 = scmp.lt.s32.totalorder %s1181, 1
        %s1185 = scalar_select %p1184, %s1181, 1
        %s1186 = smul.addr %s1183, 2
        %s1187 = sadd.s32 %s1185, %s1186
        %s1188 = smul.addr %s1187, 8
        %s1189 = scalar_lea.vmem %s5, %s1188
      $region52: #{single_conv.3} parent=47 // pred_fallthru
        _
    $region48: #{single_conv.3} parent=5 // pred_fallthru
      _
  $region6: #{single_conv.3} parent=0 // loop_footer
    %s15 = sadd.s32 1, %s11
  $region7: #{single_conv.3} parent=0 // loop_footer_branch
    %10 = sbr.rel target = $region3
  $region8: #{single_conv.3} parent=0 // loop_exit
    _

</llo_original>
